<compile_context>
chip_gen: v5e
topology: v5e:2x2
jax: 0.10.0
libtpu: 0.0.40
codegen_flags: <defaults>
</compile_context>

<pallas_src>
from functools import partial

import numpy as np
import jax
import jax.numpy as jnp
from jax.experimental import pallas as pl
from jax.experimental.pallas import tpu as pltpu


def _round_up(x, m):
    return ((x + m - 1) // m) * m


# ----------------------------------------------------------------------------
# Fused Pallas kernel: qkv projection + multi-dilation local attention + proj
# ----------------------------------------------------------------------------
def mdla_kernel(x_ref, wqkv_ref, p_ref, wproj_ref, bproj_ref, mask_ref,
                y_ref, qkv_ref, *,
                cp, kernel_size, dilation, scale, n_zero_taps):
    K = kernel_size
    half = (K - 1) // 2
    nd = len(dilation)
    bn = x_ref.shape[0]                     # folded batch*seq rows
    f32 = jnp.float32
    bf16 = jnp.bfloat16

    # --- fused qkv projection: one (BN, CP) @ (CP, 3*CP) bf16 MXU matmul ------
    qkv = jnp.dot(x_ref[...], wqkv_ref[...], preferred_element_type=f32)
    qkv_ref[...] = qkv.astype(qkv_ref.dtype)          # single lane-dense store

    # lane-tile-aligned slices (offsets are multiples of 128)
    q = qkv[:, :cp] * scale
    k = qkv[:, cp:2 * cp]
    v = qkv[:, 2 * cp:3 * cp]
    p_mat = p_ref[...]                                 # block-diag same-head matrix

    # --- per-tap shifted k/v via XLU rolls + precomputed masks; score per tap -
    s_taps = []
    v_taps = []
    for kh in range(K):
        if kh == half:                                  # centre tap: no shift
            kt, vt = k, v
        else:
            mi = kh if kh < half else kh - 1
            kt = jnp.zeros_like(k)
            vt = jnp.zeros_like(v)
            for i in range(nd):
                off = (kh - half) * dilation[i]
                shift = (-off) % bn                     # out[r] = in[r + off] (then masked)
                msk = mask_ref[mi * nd + i]             # validity * group-channel mask
                kt = kt + msk * pltpu.roll(k, shift=shift, axis=0)
                vt = vt + msk * pltpu.roll(v, shift=shift, axis=0)
        # per-head score broadcast back across the head's channels: (q*kt) @ P
        s = jnp.dot((q * kt).astype(bf16), p_mat, preferred_element_type=f32)
        s_taps.append(s)                                # kt is dead past this point
        v_taps.append(vt)

    # --- softmax over K real taps + K*(K-1) structurally-zero unfold taps -----
    m = jnp.zeros_like(s_taps[0])                       # max includes the zero-score taps
    for s in s_taps:
        m = jnp.maximum(m, s)
    denom = float(n_zero_taps) * jnp.exp(-m)
    out = jnp.zeros_like(m)
    for s, vt in zip(s_taps, v_taps):
        e = jnp.exp(s - m)
        denom = denom + e
        out = out + e * vt
    # normalize once at the end (EUP approx reciprocal; not bit-exact vs torch)
    out = out * pl.reciprocal(denom, approx=True)

    # --- fused output projection (bf16 MXU) + bias ----------------------------
    y = jnp.dot(out.astype(bf16), wproj_ref[...],
                preferred_element_type=f32) + bproj_ref[...]
    y_ref[...] = y.astype(y_ref.dtype)                  # lane-dense store


# ----------------------------------------------------------------------------
# Wrapper: pads/packs operands, one pallas_call, reassembles torch-shaped outputs
# ----------------------------------------------------------------------------
def multi_dilate_local_attention(x, qkv_w, proj_w, proj_b, *, num_heads,
                                 kernel_size=3, dilation=(1, 2, 3), qk_scale=None):
    B, N, C = x.shape
    nd = len(dilation)
    K = kernel_size
    assert K % 2 == 1, "odd kernel_size assumed (default 3)"
    assert num_heads % nd == 0, "num_heads must be a multiple of num_dilation"
    assert C % num_heads == 0 and C % nd == 0
    gc = C // nd
    hd = C // num_heads
    half = (K - 1) // 2
    scale = float(qk_scale) if qk_scale is not None else hd ** (-0.5)
    CP = _round_up(C, 128)                     # lane-dense channel padding

    # fold batches so the projection matmuls see >=128 sublane rows (MXU fill)
    b_tile = B
    for d in range(1, B + 1):
        if B % d == 0 and d * N >= 128:
            b_tile = d
            break
    G = B // b_tile
    BN = b_tile * N

    # --- pad / pack operands; all constants hoisted out of the kernel --------
    x_pad = jnp.pad(x, ((0, 0), (0, 0), (0, CP - C))).astype(jnp.bfloat16)
    x_r = x_pad.reshape(G, BN, CP)

    # torch nn.Linear weight is (out_features, in_features); transpose for x @ W.
    # Pack [Wq | Wk | Wv] so each lives in its own 128-lane tile.
    wqkv = jnp.zeros((CP, 3 * CP), jnp.float32)
    for j in range(3):
        wqkv = wqkv.at[:C, j * CP:j * CP + C].set(qkv_w[j * C:(j + 1) * C, :].T)
    wqkv = wqkv.astype(jnp.bfloat16)

    wproj = jnp.zeros((CP, CP), jnp.float32).at[:C, :C].set(proj_w.T).astype(jnp.bfloat16)
    bproj = jnp.zeros((1, CP), jnp.float32).at[0, :C].set(proj_b)

    # block-diagonal "same head" matrix: (q*k_tap) @ P == per-head score broadcast
    p_np = np.zeros((CP, CP), np.float32)
    for h in range(num_heads):
        p_np[h * hd:(h + 1) * hd, h * hd:(h + 1) * hd] = 1.0
    p_mat = jnp.asarray(p_np, jnp.bfloat16)

    # per (non-centre tap, dilation group) masks over the folded row slab:
    # validity (unfold zero padding at sequence edges / batch seams) x channel group
    rows = np.arange(BN) % N
    masks_np = np.zeros(((K - 1) * nd, BN, CP), np.float32)
    for kh in range(K):
        if kh == half:
            continue
        mi = kh if kh < half else kh - 1
        for i in range(nd):
            off = (kh - half) * dilation[i]
            valid = ((rows + off >= 0) & (rows + off < N)).astype(np.float32)
            chan = np.zeros((CP,), np.float32)
            chan[i * gc:(i + 1) * gc] = 1.0
            masks_np[mi * nd + i] = valid[:, None] * chan[None, :]
    masks = jnp.asarray(masks_np)

    kernel = partial(mdla_kernel, cp=CP, kernel_size=K, dilation=tuple(dilation),
                     scale=scale, n_zero_taps=K * (K - 1))

    y_pad, qkv_slab = pl.pallas_call(
        kernel,
        grid=(G,),
        in_specs=[
            pl.BlockSpec((None, BN, CP), lambda g: (g, 0, 0)),          # x (per step)
            pl.BlockSpec((CP, 3 * CP), lambda g: (0, 0)),               # packed Wqkv
            pl.BlockSpec((CP, CP), lambda g: (0, 0)),                   # same-head P
            pl.BlockSpec((CP, CP), lambda g: (0, 0)),                   # Wproj
            pl.BlockSpec((1, CP), lambda g: (0, 0)),                    # bproj
            pl.BlockSpec(((K - 1) * nd, BN, CP), lambda g: (0, 0, 0)),  # masks
        ],
        out_specs=(
            pl.BlockSpec((None, BN, CP), lambda g: (g, 0, 0)),          # y (padded)
            pl.BlockSpec((None, BN, 3 * CP), lambda g: (g, 0, 0)),      # qkv slab
        ),
        out_shape=(
            jax.ShapeDtypeStruct((G, BN, CP), jnp.float32),
            jax.ShapeDtypeStruct((G, BN, 3 * CP), jnp.float32),
        ),
        compiler_params=pltpu.CompilerParams(dimension_semantics=("parallel",)),
    )(x_r, wqkv, p_mat, wproj, bproj, masks)

    # unpad / permute on ~KB of data, fused into the same jit as the consumer
    y = y_pad.reshape(B, N, CP)[:, :, :C]
    qkv_full = qkv_slab.reshape(B, N, 3, CP)[:, :, :, :C]
    qkv_perm = qkv_full.reshape(B, N, 3, nd, gc).transpose(3, 2, 0, 4, 1)  # (nd,3,B,gc,N)
    x2 = None  # is_decoder=False path
    # torch returns (x, x2, v, k, q) = (y, None, qkv_perm[2], qkv_perm[1], qkv_perm[0])
    return y, x2, qkv_perm[2], qkv_perm[1], qkv_perm[0]


# ----------------------------------------------------------------------------
# Pure-JAX reference (mirrors the PyTorch module op-for-op) for validation
# ----------------------------------------------------------------------------
_HI = jax.lax.Precision.HIGHEST


def _dilate_attention_ref(q, k, v, head_dim, K, dil, scale):
    # q, k, v: (B, d, N) — torch DilateAttention layout
    B, d, N = q.shape
    h = d // head_dim
    half = (K - 1) // 2
    q_ = q.reshape(B, h, head_dim, 1, N).transpose(0, 1, 4, 3, 2)   # (B,h,N,1,hd)
    k_ = k.reshape(B, h, head_dim, N)
    v_ = v.reshape(B, h, head_dim, N)
    pos = jnp.arange(N)
    taps_k, taps_v = [], []
    for kh in range(K):
        off = (kh - half) * dil
        idx = pos + off
        valid = (idx >= 0) & (idx < N)
        idxc = jnp.clip(idx, 0, N - 1)
        kt = jnp.where(valid[None, None, None, :], k_[:, :, :, idxc], 0.0)
        vt = jnp.where(valid[None, None, None, :], v_[:, :, :, idxc], 0.0)
        for kw in range(K):
            if kw == half:                       # only the centre width column has data
                taps_k.append(kt); taps_v.append(vt)
            else:                                # zero-padded taps (still in softmax)
                taps_k.append(jnp.zeros_like(kt)); taps_v.append(jnp.zeros_like(vt))
    Kt = jnp.stack(taps_k, axis=3)               # (B,h,hd,KK,N)
    Vt = jnp.stack(taps_v, axis=3)
    k_p = Kt.transpose(0, 1, 4, 2, 3)            # (B,h,N,hd,KK)
    v_p = Vt.transpose(0, 1, 4, 3, 2)            # (B,h,N,KK,hd)
    attn = jnp.einsum('bhnod,bhndk->bhnok', q_, k_p, precision=_HI) * scale
    attn = jax.nn.softmax(attn, axis=-1)
    xo = jnp.einsum('bhnok,bhnkd->bhnod', attn, v_p, precision=_HI)
    xo = xo[:, :, :, 0, :].transpose(0, 2, 1, 3).reshape(B, N, d)
    return xo


def reference_forward(x, qkv_w, proj_w, proj_b, num_heads, kernel_size, dilation):
    B, N, C = x.shape
    nd = len(dilation)
    gc = C // nd
    hd = C // num_heads
    scale = hd ** (-0.5)
    qkv = jnp.dot(x.reshape(B * N, C), qkv_w.T, precision=_HI).reshape(B, N, 3 * C)
    qkv5 = qkv.reshape(B, N, 3, nd, gc).transpose(3, 2, 0, 4, 1)    # (nd,3,B,gc,N)
    outs = [_dilate_attention_ref(qkv5[i, 0], qkv5[i, 1], qkv5[i, 2],
                                  hd, kernel_size, dilation[i], scale)
            for i in range(nd)]
    xc = jnp.stack(outs, axis=0).transpose(1, 2, 0, 3).reshape(B, N, C)
    y = jnp.dot(xc.reshape(B * N, C), proj_w.T, precision=_HI).reshape(B, N, C) + proj_b
    return y, None, qkv5[2], qkv5[1], qkv5[0]


# ----------------------------------------------------------------------------
# Main
# ----------------------------------------------------------------------------
if __name__ == "__main__":
    B, N, C = 2, 64, 24
    num_heads = 6                      # must be a multiple of num_dilation=3
    kernel_size = 3
    dilation = (1, 2, 3)
    gc = C // len(dilation)

    key = jax.random.PRNGKey(0)
    kx, kw1, kw2, kb = jax.random.split(key, 4)
    x = jax.random.normal(kx, (B, N, C), jnp.float32)
    qkv_w = jax.random.normal(kw1, (3 * C, C), jnp.float32) * 0.2   # torch (out, in) layout
    proj_w = jax.random.normal(kw2, (C, C), jnp.float32) * 0.2
    proj_b = jax.random.normal(kb, (C,), jnp.float32) * 0.2

    fwd = jax.jit(partial(multi_dilate_local_attention, num_heads=num_heads,
                          kernel_size=kernel_size, dilation=dilation))
    y, x2, v_r, k_r, q_r = fwd(x, qkv_w, proj_w, proj_b)
    jax.block_until_ready(y)
    jax.block_until_ready(q_r)

    assert y.shape == (B, N, C)
    assert x2 is None
    assert q_r.shape == (3, B, gc, N)
    assert k_r.shape == (3, B, gc, N)
    assert v_r.shape == (3, B, gc, N)

    # validate against the pure-JAX (f32, HIGHEST precision) reference of the
    # PyTorch module; tolerances account for bf16 MXU operands + approx reciprocal
    y_ref, _, v_ref, k_ref, q_ref = reference_forward(
        x, qkv_w, proj_w, proj_b, num_heads, kernel_size, dilation)
    np.testing.assert_allclose(np.asarray(y), np.asarray(y_ref), rtol=5e-2, atol=5e-2)
    np.testing.assert_allclose(np.asarray(q_r), np.asarray(q_ref), rtol=3e-2, atol=2e-2)
    np.testing.assert_allclose(np.asarray(k_r), np.asarray(k_ref), rtol=3e-2, atol=2e-2)
    np.testing.assert_allclose(np.asarray(v_r), np.asarray(v_ref), rtol=3e-2, atol=2e-2)

    print("KERNEL_OK")
</pallas_src>

<mosaic_0001>
module attributes {stable_mosaic.version = 11 : i64} {
  func.func @mdla_kernel(%arg0: i32, %arg1: memref<1x128x128xbf16, #tpu.memory_space<vmem>>, %arg2: memref<128x384xbf16, #tpu.memory_space<vmem>>, %arg3: memref<128x128xbf16, #tpu.memory_space<vmem>>, %arg4: memref<128x128xbf16, #tpu.memory_space<vmem>>, %arg5: memref<1x128xf32, #tpu.memory_space<vmem>>, %arg6: memref<6x128x128xf32, #tpu.memory_space<vmem>>, %arg7: memref<1x128x128xf32, #tpu.memory_space<vmem>>, %arg8: memref<1x128x384xf32, #tpu.memory_space<vmem>>) attributes {dimension_semantics = [#tpu.dimension_semantics<parallel>], iteration_bounds = array<i64: 1>, scalar_prefetch = 0 : i64, scratch_operands = 0 : i64, tpu.core_type = #tpu.core_type<tc>, window_params = [{transform_indices = @transform_0, window_bounds = array<i64: 1, 128, 128>}, {pipeline_mode = #tpu.pipeline_mode<synchronous>, transform_indices = @transform_1, window_bounds = array<i64: 128, 384>}, {pipeline_mode = #tpu.pipeline_mode<synchronous>, transform_indices = @transform_2, window_bounds = array<i64: 128, 128>}, {pipeline_mode = #tpu.pipeline_mode<synchronous>, transform_indices = @transform_3, window_bounds = array<i64: 128, 128>}, {pipeline_mode = #tpu.pipeline_mode<synchronous>, transform_indices = @transform_4, window_bounds = array<i64: 1, 128>}, {pipeline_mode = #tpu.pipeline_mode<synchronous>, transform_indices = @transform_5, window_bounds = array<i64: 6, 128, 128>}, {transform_indices = @transform_6, window_bounds = array<i64: 1, 128, 128>}, {transform_indices = @transform_7, window_bounds = array<i64: 1, 128, 384>}]} {
    %c0 = arith.constant 0 : index
    %c0_0 = arith.constant 0 : index
    %c0_1 = arith.constant 0 : index
    %0 = vector.load %arg1[%c0, %c0_0, %c0_1] : memref<1x128x128xbf16, #tpu.memory_space<vmem>>, vector<1x128x128xbf16>
    %1 = vector.shape_cast %0 : vector<1x128x128xbf16> to vector<128x128xbf16>
    %c0_2 = arith.constant 0 : index
    %c0_3 = arith.constant 0 : index
    %2 = vector.load %arg2[%c0_2, %c0_3] : memref<128x384xbf16, #tpu.memory_space<vmem>>, vector<128x384xbf16>
    %cst = arith.constant dense<0.000000e+00> : vector<128x384xf32>
    %3 = tpu.matmul %1, %2, %cst {dimension_numbers = #tpu.dot_dimension_numbers<[1], [0], [0], [1], [0, 0, 1, 1], [], []>} : vector<128x128xbf16>, vector<128x384xbf16>, vector<128x384xf32> -> vector<128x384xf32>
    %c0_4 = arith.constant 0 : index
    %c0_5 = arith.constant 0 : index
    %c0_6 = arith.constant 0 : index
    %4 = vector.load %arg8[%c0_4, %c0_5, %c0_6] : memref<1x128x384xf32, #tpu.memory_space<vmem>>, vector<1x128x384xf32>
    %5 = vector.shape_cast %4 : vector<1x128x384xf32> to vector<128x384xf32>
    %6 = vector.shape_cast %3 : vector<128x384xf32> to vector<1x128x384xf32>
    tpu.vector_store %arg8[%c0_4, %c0_5, %c0_6], %6 {strides = array<i32>} : memref<1x128x384xf32, #tpu.memory_space<vmem>>, vector<1x128x384xf32>,
    %7 = vector.extract_strided_slice %3 {offsets = [0, 0], sizes = [128, 128], strides = [1, 1]} : vector<128x384xf32> to vector<128x128xf32>
    %cst_7 = arith.constant 5.000000e-01 : f32
    %8 = vector.broadcast %cst_7 : f32 to vector<128x128xf32>
    %9 = arith.mulf %7, %8 : vector<128x128xf32>
    %10 = vector.extract_strided_slice %3 {offsets = [0, 128], sizes = [128, 128], strides = [1, 1]} : vector<128x384xf32> to vector<128x128xf32>
    %11 = vector.extract_strided_slice %3 {offsets = [0, 256], sizes = [128, 128], strides = [1, 1]} : vector<128x384xf32> to vector<128x128xf32>
    %c0_8 = arith.constant 0 : index
    %c0_9 = arith.constant 0 : index
    %12 = vector.load %arg3[%c0_8, %c0_9] : memref<128x128xbf16, #tpu.memory_space<vmem>>, vector<128x128xbf16>
    %cst_10 = arith.constant 0.000000e+00 : f32
    %13 = vector.broadcast %cst_10 : f32 to vector<128x128xf32>
    %cst_11 = arith.constant 0.000000e+00 : f32
    %14 = vector.broadcast %cst_11 : f32 to vector<128x128xf32>
    %c0_12 = arith.constant 0 : index
    %c0_13 = arith.constant 0 : index
    %c0_14 = arith.constant 0 : index
    %15 = vector.load %arg6[%c0_12, %c0_13, %c0_14] : memref<6x128x128xf32, #tpu.memory_space<vmem>>, vector<1x128x128xf32>
    %16 = vector.shape_cast %15 : vector<1x128x128xf32> to vector<128x128xf32>
    %c1_i32 = arith.constant 1 : i32
    %17 = tpu.dynamic_rotate %10 by %c1_i32 dim 0 : vector<128x128xf32>, i32 -> vector<128x128xf32>
    %18 = arith.mulf %16, %17 : vector<128x128xf32>
    %19 = arith.addf %13, %18 : vector<128x128xf32>
    %c1_i32_15 = arith.constant 1 : i32
    %20 = tpu.dynamic_rotate %11 by %c1_i32_15 dim 0 : vector<128x128xf32>, i32 -> vector<128x128xf32>
    %21 = arith.mulf %16, %20 : vector<128x128xf32>
    %22 = arith.addf %14, %21 : vector<128x128xf32>
    %c1 = arith.constant 1 : index
    %c0_16 = arith.constant 0 : index
    %c0_17 = arith.constant 0 : index
    %23 = vector.load %arg6[%c1, %c0_16, %c0_17] : memref<6x128x128xf32, #tpu.memory_space<vmem>>, vector<1x128x128xf32>
    %24 = vector.shape_cast %23 : vector<1x128x128xf32> to vector<128x128xf32>
    %c2_i32 = arith.constant 2 : i32
    %25 = tpu.dynamic_rotate %10 by %c2_i32 dim 0 : vector<128x128xf32>, i32 -> vector<128x128xf32>
    %26 = arith.mulf %24, %25 : vector<128x128xf32>
    %27 = arith.addf %19, %26 : vector<128x128xf32>
    %c2_i32_18 = arith.constant 2 : i32
    %28 = tpu.dynamic_rotate %11 by %c2_i32_18 dim 0 : vector<128x128xf32>, i32 -> vector<128x128xf32>
    %29 = arith.mulf %24, %28 : vector<128x128xf32>
    %30 = arith.addf %22, %29 : vector<128x128xf32>
    %c2 = arith.constant 2 : index
    %c0_19 = arith.constant 0 : index
    %c0_20 = arith.constant 0 : index
    %31 = vector.load %arg6[%c2, %c0_19, %c0_20] : memref<6x128x128xf32, #tpu.memory_space<vmem>>, vector<1x128x128xf32>
    %32 = vector.shape_cast %31 : vector<1x128x128xf32> to vector<128x128xf32>
    %c3_i32 = arith.constant 3 : i32
    %33 = tpu.dynamic_rotate %10 by %c3_i32 dim 0 : vector<128x128xf32>, i32 -> vector<128x128xf32>
    %34 = arith.mulf %32, %33 : vector<128x128xf32>
    %35 = arith.addf %27, %34 : vector<128x128xf32>
    %c3_i32_21 = arith.constant 3 : i32
    %36 = tpu.dynamic_rotate %11 by %c3_i32_21 dim 0 : vector<128x128xf32>, i32 -> vector<128x128xf32>
    %37 = arith.mulf %32, %36 : vector<128x128xf32>
    %38 = arith.addf %30, %37 : vector<128x128xf32>
    %39 = arith.mulf %9, %35 : vector<128x128xf32>
    %40 = arith.truncf %39 : vector<128x128xf32> to vector<128x128xbf16>
    %cst_22 = arith.constant dense<0.000000e+00> : vector<128x128xf32>
    %41 = tpu.matmul %40, %12, %cst_22 {dimension_numbers = #tpu.dot_dimension_numbers<[1], [0], [0], [1], [0, 0, 1, 1], [], []>} : vector<128x128xbf16>, vector<128x128xbf16>, vector<128x128xf32> -> vector<128x128xf32>
    %42 = arith.mulf %9, %10 : vector<128x128xf32>
    %43 = arith.truncf %42 : vector<128x128xf32> to vector<128x128xbf16>
    %cst_23 = arith.constant dense<0.000000e+00> : vector<128x128xf32>
    %44 = tpu.matmul %43, %12, %cst_23 {dimension_numbers = #tpu.dot_dimension_numbers<[1], [0], [0], [1], [0, 0, 1, 1], [], []>} : vector<128x128xbf16>, vector<128x128xbf16>, vector<128x128xf32> -> vector<128x128xf32>
    %cst_24 = arith.constant 0.000000e+00 : f32
    %45 = vector.broadcast %cst_24 : f32 to vector<128x128xf32>
    %cst_25 = arith.constant 0.000000e+00 : f32
    %46 = vector.broadcast %cst_25 : f32 to vector<128x128xf32>
    %c3 = arith.constant 3 : index
    %c0_26 = arith.constant 0 : index
    %c0_27 = arith.constant 0 : index
    %47 = vector.load %arg6[%c3, %c0_26, %c0_27] : memref<6x128x128xf32, #tpu.memory_space<vmem>>, vector<1x128x128xf32>
    %48 = vector.shape_cast %47 : vector<1x128x128xf32> to vector<128x128xf32>
    %c127_i32 = arith.constant 127 : i32
    %49 = tpu.dynamic_rotate %10 by %c127_i32 dim 0 : vector<128x128xf32>, i32 -> vector<128x128xf32>
    %50 = arith.mulf %48, %49 : vector<128x128xf32>
    %51 = arith.addf %45, %50 : vector<128x128xf32>
    %c127_i32_28 = arith.constant 127 : i32
    %52 = tpu.dynamic_rotate %11 by %c127_i32_28 dim 0 : vector<128x128xf32>, i32 -> vector<128x128xf32>
    %53 = arith.mulf %48, %52 : vector<128x128xf32>
    %54 = arith.addf %46, %53 : vector<128x128xf32>
    %c4 = arith.constant 4 : index
    %c0_29 = arith.constant 0 : index
    %c0_30 = arith.constant 0 : index
    %55 = vector.load %arg6[%c4, %c0_29, %c0_30] : memref<6x128x128xf32, #tpu.memory_space<vmem>>, vector<1x128x128xf32>
    %56 = vector.shape_cast %55 : vector<1x128x128xf32> to vector<128x128xf32>
    %c126_i32 = arith.constant 126 : i32
    %57 = tpu.dynamic_rotate %10 by %c126_i32 dim 0 : vector<128x128xf32>, i32 -> vector<128x128xf32>
    %58 = arith.mulf %56, %57 : vector<128x128xf32>
    %59 = arith.addf %51, %58 : vector<128x128xf32>
    %c126_i32_31 = arith.constant 126 : i32
    %60 = tpu.dynamic_rotate %11 by %c126_i32_31 dim 0 : vector<128x128xf32>, i32 -> vector<128x128xf32>
    %61 = arith.mulf %56, %60 : vector<128x128xf32>
    %62 = arith.addf %54, %61 : vector<128x128xf32>
    %c5 = arith.constant 5 : index
    %c0_32 = arith.constant 0 : index
    %c0_33 = arith.constant 0 : index
    %63 = vector.load %arg6[%c5, %c0_32, %c0_33] : memref<6x128x128xf32, #tpu.memory_space<vmem>>, vector<1x128x128xf32>
    %64 = vector.shape_cast %63 : vector<1x128x128xf32> to vector<128x128xf32>
    %c125_i32 = arith.constant 125 : i32
    %65 = tpu.dynamic_rotate %10 by %c125_i32 dim 0 : vector<128x128xf32>, i32 -> vector<128x128xf32>
    %66 = arith.mulf %64, %65 : vector<128x128xf32>
    %67 = arith.addf %59, %66 : vector<128x128xf32>
    %c125_i32_34 = arith.constant 125 : i32
    %68 = tpu.dynamic_rotate %11 by %c125_i32_34 dim 0 : vector<128x128xf32>, i32 -> vector<128x128xf32>
    %69 = arith.mulf %64, %68 : vector<128x128xf32>
    %70 = arith.addf %62, %69 : vector<128x128xf32>
    %71 = arith.mulf %9, %67 : vector<128x128xf32>
    %72 = arith.truncf %71 : vector<128x128xf32> to vector<128x128xbf16>
    %cst_35 = arith.constant dense<0.000000e+00> : vector<128x128xf32>
    %73 = tpu.matmul %72, %12, %cst_35 {dimension_numbers = #tpu.dot_dimension_numbers<[1], [0], [0], [1], [0, 0, 1, 1], [], []>} : vector<128x128xbf16>, vector<128x128xbf16>, vector<128x128xf32> -> vector<128x128xf32>
    %cst_36 = arith.constant 0.000000e+00 : f32
    %74 = vector.broadcast %cst_36 : f32 to vector<128x128xf32>
    %75 = arith.maximumf %74, %41 : vector<128x128xf32>
    %76 = arith.maximumf %75, %44 : vector<128x128xf32>
    %77 = arith.maximumf %76, %73 : vector<128x128xf32>
    %cst_37 = arith.constant 0.000000e+00 : f32
    %78 = vector.broadcast %cst_37 : f32 to vector<128x128xf32>
    %79 = arith.subf %78, %77 : vector<128x128xf32>
    %80 = math.exp %79 : vector<128x128xf32>
    %cst_38 = arith.constant 6.000000e+00 : f32
    %81 = vector.broadcast %cst_38 : f32 to vector<128x128xf32>
    %82 = arith.mulf %81, %80 : vector<128x128xf32>
    %cst_39 = arith.constant 0.000000e+00 : f32
    %83 = vector.broadcast %cst_39 : f32 to vector<128x128xf32>
    %84 = arith.subf %41, %77 : vector<128x128xf32>
    %85 = math.exp %84 : vector<128x128xf32>
    %86 = arith.addf %82, %85 : vector<128x128xf32>
    %87 = arith.mulf %85, %38 : vector<128x128xf32>
    %88 = arith.addf %83, %87 : vector<128x128xf32>
    %89 = arith.subf %44, %77 : vector<128x128xf32>
    %90 = math.exp %89 : vector<128x128xf32>
    %91 = arith.addf %86, %90 : vector<128x128xf32>
    %92 = arith.mulf %90, %11 : vector<128x128xf32>
    %93 = arith.addf %88, %92 : vector<128x128xf32>
    %94 = arith.subf %73, %77 : vector<128x128xf32>
    %95 = math.exp %94 : vector<128x128xf32>
    %96 = arith.addf %91, %95 : vector<128x128xf32>
    %97 = arith.mulf %95, %70 : vector<128x128xf32>
    %98 = arith.addf %93, %97 : vector<128x128xf32>
    %99 = tpu.reciprocal %96 {approx = true} : vector<128x128xf32> -> vector<128x128xf32>
    %100 = arith.mulf %98, %99 : vector<128x128xf32>
    %101 = arith.truncf %100 : vector<128x128xf32> to vector<128x128xbf16>
    %c0_40 = arith.constant 0 : index
    %c0_41 = arith.constant 0 : index
    %102 = vector.load %arg4[%c0_40, %c0_41] : memref<128x128xbf16, #tpu.memory_space<vmem>>, vector<128x128xbf16>
    %cst_42 = arith.constant dense<0.000000e+00> : vector<128x128xf32>
    %103 = tpu.matmul %101, %102, %cst_42 {dimension_numbers = #tpu.dot_dimension_numbers<[1], [0], [0], [1], [0, 0, 1, 1], [], []>} : vector<128x128xbf16>, vector<128x128xbf16>, vector<128x128xf32> -> vector<128x128xf32>
    %c0_43 = arith.constant 0 : index
    %c0_44 = arith.constant 0 : index
    %104 = vector.load %arg5[%c0_43, %c0_44] : memref<1x128xf32, #tpu.memory_space<vmem>>, vector<1x128xf32>
    %105 = vector.broadcast %104 : vector<1x128xf32> to vector<128x128xf32>
    %106 = arith.addf %103, %105 : vector<128x128xf32>
    %c0_45 = arith.constant 0 : index
    %c0_46 = arith.constant 0 : index
    %c0_47 = arith.constant 0 : index
    %107 = vector.load %arg7[%c0_45, %c0_46, %c0_47] : memref<1x128x128xf32, #tpu.memory_space<vmem>>, vector<1x128x128xf32>
    %108 = vector.shape_cast %107 : vector<1x128x128xf32> to vector<128x128xf32>
    %109 = vector.shape_cast %106 : vector<128x128xf32> to vector<1x128x128xf32>
    tpu.vector_store %arg7[%c0_45, %c0_46, %c0_47], %109 {strides = array<i32>} : memref<1x128x128xf32, #tpu.memory_space<vmem>>, vector<1x128x128xf32>,
    return
  }
  func.func @transform_0(%arg0: i32) -> (i32, i32, i32) {
    %c0_i32 = arith.constant 0 : i32
    %c0_i32_0 = arith.constant 0 : i32
    %c0_i32_1 = arith.constant 0 : i32
    return %arg0, %c0_i32, %c0_i32_0 : i32, i32, i32
  }
  func.func @transform_1(%arg0: i32) -> (i32, i32) {
    %c0_i32 = arith.constant 0 : i32
    %c0_i32_0 = arith.constant 0 : i32
    %c0_i32_1 = arith.constant 0 : i32
    return %c0_i32, %c0_i32_0 : i32, i32
  }
  func.func @transform_2(%arg0: i32) -> (i32, i32) {
    %c0_i32 = arith.constant 0 : i32
    %c0_i32_0 = arith.constant 0 : i32
    %c0_i32_1 = arith.constant 0 : i32
    return %c0_i32, %c0_i32_0 : i32, i32
  }
  func.func @transform_3(%arg0: i32) -> (i32, i32) {
    %c0_i32 = arith.constant 0 : i32
    %c0_i32_0 = arith.constant 0 : i32
    %c0_i32_1 = arith.constant 0 : i32
    return %c0_i32, %c0_i32_0 : i32, i32
  }
  func.func @transform_4(%arg0: i32) -> (i32, i32) {
    %c0_i32 = arith.constant 0 : i32
    %c0_i32_0 = arith.constant 0 : i32
    %c0_i32_1 = arith.constant 0 : i32
    return %c0_i32, %c0_i32_0 : i32, i32
  }
  func.func @transform_5(%arg0: i32) -> (i32, i32, i32) {
    %c0_i32 = arith.constant 0 : i32
    %c0_i32_0 = arith.constant 0 : i32
    %c0_i32_1 = arith.constant 0 : i32
    %c0_i32_2 = arith.constant 0 : i32
    return %c0_i32, %c0_i32_0, %c0_i32_1 : i32, i32, i32
  }
  func.func @transform_6(%arg0: i32) -> (i32, i32, i32) {
    %c0_i32 = arith.constant 0 : i32
    %c0_i32_0 = arith.constant 0 : i32
    %c0_i32_1 = arith.constant 0 : i32
    return %arg0, %c0_i32, %c0_i32_0 : i32, i32, i32
  }
  func.func @transform_7(%arg0: i32) -> (i32, i32, i32) {
    %c0_i32 = arith.constant 0 : i32
    %c0_i32_0 = arith.constant 0 : i32
    %c0_i32_1 = arith.constant 0 : i32
    return %arg0, %c0_i32, %c0_i32_0 : i32, i32, i32
  }
}

</mosaic_0001>

<llo_original>
// kernel: multi_dilate_local_attention.1
$region0: #{multi_dilate_local_attention.1}
  #allocation0 [shape = 'u32[]', space=smem, size = 0x4, offset = 0x4, fixed_abs, tag = 'smem constant byte address 0x4 - core index']
  #allocation1 [shape = 'u32[72,128]{1,0:T(1,128)}', space=vmem, size = 0x9000, scoped, tag = 'internal scratch']
  %s0 = inlined_call_operand.vmem [shape: bf16[1,128,128], index: 0, kind: input, shape index: {}]
  %s1 = inlined_call_operand.vmem [shape: bf16[128,384], index: 1, kind: input, shape index: {}]
  %s2 = inlined_call_operand.vmem [shape: bf16[128,128], index: 2, kind: input, shape index: {}]
  %s3 = inlined_call_operand.vmem [shape: bf16[128,128], index: 3, kind: input, shape index: {}]
  %s4 = inlined_call_operand.vmem [shape: f32[1,128], index: 4, kind: input, shape index: {}]
  %s5 = inlined_call_operand.hbm [shape: f32[6,128,128], index: 5, kind: input, shape index: {}]
  %s6 = inlined_call_operand.vmem [shape: f32[1,128,128], index: 6, kind: output, shape index: {0}]
  %s7 = inlined_call_operand.vmem [shape: f32[1,128,384], index: 7, kind: output, shape index: {1}]
  %8 = xla_tuple %s6, %s7
  %s9 = sld [smem:[#allocation0]]
  $region46: #{multi_dilate_local_attention.1} parent=0
    _
  %s11 = ssub.s32 1, %s9
  %s12 = scalar_select 0, %s11, %s9
  $region1: #{multi_dilate_local_attention.1} parent=0
    #allocation2 [shape = 'u8[393216]{0}', space=vmem, size = 0x60000, scoped, tag = 'input window, operand 5, single buffered']
    #allocation3 [shape = 's32[1]{0}', space=sflag, size = 0x4, scoped, tag = 'scoped memory for multi_dilate_local_attention.1']
    %13 = vsyncpa [#allocation3], 0
    // Predicated region
    $region2: #{multi_dilate_local_attention.1} parent=1 // pred_check
      _
    $region3: #{multi_dilate_local_attention.1} parent=1 // pred_check_branch
      %15 = sbr.rel (0) target = $region5
    $region4: #{multi_dilate_local_attention.1} parent=1 // pred_region
      _
    $region5: #{multi_dilate_local_attention.1} parent=1 // pred_fallthru
      _
    // Predicated region
    $region6: #{multi_dilate_local_attention.1} parent=1 // pred_check
      _
    $region7: #{multi_dilate_local_attention.1} parent=1 // pred_check_branch
      %17 = sbr.rel (0) target = $region9
    $region8: #{multi_dilate_local_attention.1} parent=1 // pred_region
      _
    $region9: #{multi_dilate_local_attention.1} parent=1 // pred_fallthru
      _
    // Predicated region
    $region10: #{multi_dilate_local_attention.1} parent=1 // pred_check
      _
    $region11: #{multi_dilate_local_attention.1} parent=1 // pred_check_branch
      %19 = sbr.rel (0) target = $region13
    $region12: #{multi_dilate_local_attention.1} parent=1 // pred_region
      _
    $region13: #{multi_dilate_local_attention.1} parent=1 // pred_fallthru
      _
    // Predicated region
    $region14: #{multi_dilate_local_attention.1} parent=1 // pred_check
      _
    $region15: #{multi_dilate_local_attention.1} parent=1 // pred_check_branch
      %21 = sbr.rel (0) target = $region17
    $region16: #{multi_dilate_local_attention.1} parent=1 // pred_region
      _
    $region17: #{multi_dilate_local_attention.1} parent=1 // pred_fallthru
      _
    // Predicated region
    $region18: #{multi_dilate_local_attention.1} parent=1 // pred_check
      _
    $region19: #{multi_dilate_local_attention.1} parent=1 // pred_check_branch
      %23 = sbr.rel (0) target = $region21
    $region20: #{multi_dilate_local_attention.1} parent=1 // pred_region
      _
    $region21: #{multi_dilate_local_attention.1} parent=1 // pred_fallthru
      _
    // Predicated region
    $region22: #{multi_dilate_local_attention.1} parent=1 // pred_check
      _
    $region23: #{multi_dilate_local_attention.1} parent=1 // pred_check_branch
      %25 = sbr.rel (0) target = $region25
    $region24: #{multi_dilate_local_attention.1} parent=1 // pred_region
      %27 = vsyncadd [#allocation3], 0
      %s28 = sshll.u32 %s5, 4
      %s29 = int_to_ptr.hbm [resolvable:$true] %s28
      %s30 = sshll.u32 [#allocation2], 4
      %s31 = int_to_ptr.vmem [resolvable:$true] %s30
      %36 = dma.hbm_to_vmem [thread:$0]  %s29, 12288, %s31, [#allocation3], 128, 128, 8
    $region25: #{multi_dilate_local_attention.1} parent=1 // pred_fallthru
      _
    // Predicated region
    $region26: #{multi_dilate_local_attention.1} parent=1 // pred_check
      _
    $region27: #{multi_dilate_local_attention.1} parent=1 // pred_check_branch
      %38 = sbr.rel (0) target = $region29
    $region28: #{multi_dilate_local_attention.1} parent=1 // pred_region
      %40 = dma.done [#allocation3], 12288
    $region29: #{multi_dilate_local_attention.1} parent=1 // pred_fallthru
      _
    %v41 = vld [vmem:[%s0] sm:$0xf]
    %v42 = vld [vmem:[%s0 + $0x4] sm:$0xf]
    %v43 = vld [vmem:[%s0 + $0x8] sm:$0xf]
    %v44 = vld [vmem:[%s0 + $0xc] sm:$0xf]
    %v45 = vld [vmem:[%s0 + $0x10] sm:$0xf]
    %v46 = vld [vmem:[%s0 + $0x14] sm:$0xf]
    %v47 = vld [vmem:[%s0 + $0x18] sm:$0xf]
    %v48 = vld [vmem:[%s0 + $0x1c] sm:$0xf]
    %v49 = vld [vmem:[%s0 + $0x20] sm:$0xf]
    %v50 = vld [vmem:[%s0 + $0x24] sm:$0xf]
    %v51 = vld [vmem:[%s0 + $0x28] sm:$0xf]
    %v52 = vld [vmem:[%s0 + $0x2c] sm:$0xf]
    %v53 = vld [vmem:[%s0 + $0x30] sm:$0xf]
    %v54 = vld [vmem:[%s0 + $0x34] sm:$0xf]
    %v55 = vld [vmem:[%s0 + $0x38] sm:$0xf]
    %v56 = vld [vmem:[%s0 + $0x3c] sm:$0xf]
    %v57 = vld [vmem:[%s1] sm:$0xff]
    %v58 = vld [vmem:[%s1 + $0x8] sm:$0xf]
    %v59 = vld [vmem:[%s1 + $0xc] sm:$0xff]
    %v60 = vld [vmem:[%s1 + $0x14] sm:$0xf]
    %v61 = vld [vmem:[%s1 + $0x18] sm:$0xff]
    %v62 = vld [vmem:[%s1 + $0x20] sm:$0xf]
    %v63 = vld [vmem:[%s1 + $0x24] sm:$0xff]
    %v64 = vld [vmem:[%s1 + $0x2c] sm:$0xf]
    %v65 = vld [vmem:[%s1 + $0x30] sm:$0xff]
    %v66 = vld [vmem:[%s1 + $0x38] sm:$0xf]
    %v67 = vld [vmem:[%s1 + $0x3c] sm:$0xff]
    %v68 = vld [vmem:[%s1 + $0x44] sm:$0xf]
    %v69 = vld [vmem:[%s1 + $0x48] sm:$0xff]
    %v70 = vld [vmem:[%s1 + $0x50] sm:$0xf]
    %v71 = vld [vmem:[%s1 + $0x54] sm:$0xff]
    %v72 = vld [vmem:[%s1 + $0x5c] sm:$0xf]
    %v73 = vld [vmem:[%s1 + $0x60] sm:$0xff]
    %v74 = vld [vmem:[%s1 + $0x68] sm:$0xf]
    %v75 = vld [vmem:[%s1 + $0x6c] sm:$0xff]
    %v76 = vld [vmem:[%s1 + $0x74] sm:$0xf]
    %v77 = vld [vmem:[%s1 + $0x78] sm:$0xff]
    %v78 = vld [vmem:[%s1 + $0x80] sm:$0xf]
    %v79 = vld [vmem:[%s1 + $0x84] sm:$0xff]
    %v80 = vld [vmem:[%s1 + $0x8c] sm:$0xf]
    %v81 = vld [vmem:[%s1 + $0x90] sm:$0xff]
    %v82 = vld [vmem:[%s1 + $0x98] sm:$0xf]
    %v83 = vld [vmem:[%s1 + $0x9c] sm:$0xff]
    %v84 = vld [vmem:[%s1 + $0xa4] sm:$0xf]
    %v85 = vld [vmem:[%s1 + $0xa8] sm:$0xff]
    %v86 = vld [vmem:[%s1 + $0xb0] sm:$0xf]
    %v87 = vld [vmem:[%s1 + $0xb4] sm:$0xff]
    %v88 = vld [vmem:[%s1 + $0xbc] sm:$0xf]
    %v105 = vunpack.c.l.b16 %v41
    %v106 = vunpack.c.l.b16 %v42
    %v107 = vunpack.c.l.b16 %v43
    %v108 = vunpack.c.l.b16 %v44
    %v109 = vunpack.c.l.b16 %v45
    %v110 = vunpack.c.l.b16 %v46
    %v111 = vunpack.c.l.b16 %v47
    %v112 = vunpack.c.l.b16 %v48
    %v113 = vunpack.c.l.b16 %v49
    %v114 = vunpack.c.l.b16 %v50
    %v115 = vunpack.c.l.b16 %v51
    %v116 = vunpack.c.l.b16 %v52
    %v117 = vunpack.c.l.b16 %v53
    %v118 = vunpack.c.l.b16 %v54
    %v119 = vunpack.c.l.b16 %v55
    %v120 = vunpack.c.l.b16 %v56
    %v121 = vpack.c.b16 %v106, %v105
    %v122 = vpack.c.b16 %v108, %v107
    %v123 = vpack.c.b16 %v110, %v109
    %v124 = vpack.c.b16 %v112, %v111
    %v125 = vpack.c.b16 %v114, %v113
    %v126 = vpack.c.b16 %v116, %v115
    %v127 = vpack.c.b16 %v118, %v117
    %v128 = vpack.c.b16 %v120, %v119
    %v169 = vunpack.c.l.b16 %v57
    %v170 = vunpack.c.h.b16 %v57
    %v171 = vunpack.c.l.b16 %v58
    %v172 = vunpack.c.l.b16 %v59
    %v173 = vunpack.c.h.b16 %v59
    %v174 = vunpack.c.l.b16 %v60
    %v175 = vunpack.c.l.b16 %v61
    %v176 = vunpack.c.h.b16 %v61
    %v177 = vunpack.c.l.b16 %v62
    %v178 = vunpack.c.l.b16 %v63
    %v179 = vunpack.c.h.b16 %v63
    %v180 = vunpack.c.l.b16 %v64
    %v181 = vunpack.c.l.b16 %v65
    %v182 = vunpack.c.h.b16 %v65
    %v183 = vunpack.c.l.b16 %v66
    %v184 = vunpack.c.l.b16 %v67
    %v185 = vunpack.c.h.b16 %v67
    %v186 = vunpack.c.l.b16 %v68
    %v187 = vunpack.c.l.b16 %v69
    %v188 = vunpack.c.h.b16 %v69
    %v189 = vunpack.c.l.b16 %v70
    %v190 = vunpack.c.l.b16 %v71
    %v191 = vunpack.c.h.b16 %v71
    %v192 = vunpack.c.l.b16 %v72
    %v193 = vunpack.c.l.b16 %v73
    %v194 = vunpack.c.h.b16 %v73
    %v195 = vunpack.c.l.b16 %v74
    %v196 = vunpack.c.l.b16 %v75
    %v197 = vunpack.c.h.b16 %v75
    %v198 = vunpack.c.l.b16 %v76
    %v199 = vunpack.c.l.b16 %v77
    %v200 = vunpack.c.h.b16 %v77
    %v201 = vunpack.c.l.b16 %v78
    %v202 = vunpack.c.l.b16 %v79
    %v203 = vunpack.c.h.b16 %v79
    %v204 = vunpack.c.l.b16 %v80
    %v205 = vunpack.c.l.b16 %v81
    %v206 = vunpack.c.h.b16 %v81
    %v207 = vunpack.c.l.b16 %v82
    %v208 = vunpack.c.l.b16 %v83
    %v209 = vunpack.c.h.b16 %v83
    %v210 = vunpack.c.l.b16 %v84
    %v211 = vunpack.c.l.b16 %v85
    %v212 = vunpack.c.h.b16 %v85
    %v213 = vunpack.c.l.b16 %v86
    %v214 = vunpack.c.l.b16 %v87
    %v215 = vunpack.c.h.b16 %v87
    %v216 = vunpack.c.l.b16 %v88
    %v217 = vpack.c.b16 %v172, %v169
    %v218 = vpack.c.b16 %v173, %v170
    %v219 = vpack.c.b16 %v174, %v171
    %v220 = vpack.c.b16 %v178, %v175
    %v221 = vpack.c.b16 %v179, %v176
    %v222 = vpack.c.b16 %v180, %v177
    %v223 = vpack.c.b16 %v184, %v181
    %v224 = vpack.c.b16 %v185, %v182
    %v225 = vpack.c.b16 %v186, %v183
    %v226 = vpack.c.b16 %v190, %v187
    %v227 = vpack.c.b16 %v191, %v188
    %v228 = vpack.c.b16 %v192, %v189
    %v229 = vpack.c.b16 %v196, %v193
    %v230 = vpack.c.b16 %v197, %v194
    %v231 = vpack.c.b16 %v198, %v195
    %v232 = vpack.c.b16 %v202, %v199
    %v233 = vpack.c.b16 %v203, %v200
    %v234 = vpack.c.b16 %v204, %v201
    %v235 = vpack.c.b16 %v208, %v205
    %v236 = vpack.c.b16 %v209, %v206
    %v237 = vpack.c.b16 %v210, %v207
    %v238 = vpack.c.b16 %v214, %v211
    %v239 = vpack.c.b16 %v215, %v212
    %v240 = vpack.c.b16 %v216, %v213
    %265 = vmatpush.bf16.msra.mxu0 %v238
    %266 = vmatpush.bf16.msra.mxu0 %v235
    %267 = vmatpush.bf16.msra.mxu0 %v232
    %268 = vmatpush.bf16.msra.mxu0 %v229
    %269 = vmatpush.bf16.msra.mxu0 %v226
    %270 = vmatpush.bf16.msra.mxu0 %v223
    %271 = vmatpush.bf16.msra.mxu0 %v220
    %272 = vmatpush.bf16.msra.mxu0 %v217
    %273 = vmatmul.bf16.gmra.mxu0 %v121
    %v274 = vpop.f32.mrf.mxu0
    %v275 = vadd.f32 0.0, %v274
    %v276 = vpop.f32.mrf.mxu0
    %v277 = vadd.f32 0.0, %v276
    %278 = vmatmul.bf16.gmra.mxu0 %v122
    %v279 = vpop.f32.mrf.mxu0
    %v280 = vadd.f32 0.0, %v279
    %v281 = vpop.f32.mrf.mxu0
    %v282 = vadd.f32 0.0, %v281
    %283 = vmatmul.bf16.gmra.mxu0 %v123
    %v284 = vpop.f32.mrf.mxu0
    %v285 = vadd.f32 0.0, %v284
    %v286 = vpop.f32.mrf.mxu0
    %v287 = vadd.f32 0.0, %v286
    %288 = vmatmul.bf16.gmra.mxu0 %v124
    %v289 = vpop.f32.mrf.mxu0
    %v290 = vadd.f32 0.0, %v289
    %v291 = vpop.f32.mrf.mxu0
    %v292 = vadd.f32 0.0, %v291
    %293 = vmatmul.bf16.gmra.mxu0 %v125
    %v294 = vpop.f32.mrf.mxu0
    %v295 = vadd.f32 0.0, %v294
    %v296 = vpop.f32.mrf.mxu0
    %v297 = vadd.f32 0.0, %v296
    %298 = vmatmul.bf16.gmra.mxu0 %v126
    %v299 = vpop.f32.mrf.mxu0
    %v300 = vadd.f32 0.0, %v299
    %v301 = vpop.f32.mrf.mxu0
    %v302 = vadd.f32 0.0, %v301
    %303 = vmatmul.bf16.gmra.mxu0 %v127
    %v304 = vpop.f32.mrf.mxu0
    %v305 = vadd.f32 0.0, %v304
    %v306 = vpop.f32.mrf.mxu0
    %v307 = vadd.f32 0.0, %v306
    %308 = vmatmul.bf16.gmra.mxu0 %v128
    %v309 = vpop.f32.mrf.mxu0
    %v310 = vadd.f32 0.0, %v309
    %v311 = vpop.f32.mrf.mxu0
    %v312 = vadd.f32 0.0, %v311
    %313 = vdwg.mxu0
    %314 = vmatpush.bf16.msra.mxu0 %v239
    %315 = vmatpush.bf16.msra.mxu0 %v236
    %316 = vmatpush.bf16.msra.mxu0 %v233
    %317 = vmatpush.bf16.msra.mxu0 %v230
    %318 = vmatpush.bf16.msra.mxu0 %v227
    %319 = vmatpush.bf16.msra.mxu0 %v224
    %320 = vmatpush.bf16.msra.mxu0 %v221
    %321 = vmatpush.bf16.msra.mxu0 %v218
    %322 = vmatmul.bf16.gmra.mxu0 %v121
    %v323 = vpop.f32.mrf.mxu0
    %v324 = vadd.f32 0.0, %v323
    %v325 = vpop.f32.mrf.mxu0
    %v326 = vadd.f32 0.0, %v325
    %327 = vmatmul.bf16.gmra.mxu0 %v122
    %v328 = vpop.f32.mrf.mxu0
    %v329 = vadd.f32 0.0, %v328
    %v330 = vpop.f32.mrf.mxu0
    %v331 = vadd.f32 0.0, %v330
    %332 = vmatmul.bf16.gmra.mxu0 %v123
    %v333 = vpop.f32.mrf.mxu0
    %v334 = vadd.f32 0.0, %v333
    %v335 = vpop.f32.mrf.mxu0
    %v336 = vadd.f32 0.0, %v335
    %337 = vmatmul.bf16.gmra.mxu0 %v124
    %v338 = vpop.f32.mrf.mxu0
    %v339 = vadd.f32 0.0, %v338
    %v340 = vpop.f32.mrf.mxu0
    %v341 = vadd.f32 0.0, %v340
    %342 = vmatmul.bf16.gmra.mxu0 %v125
    %v343 = vpop.f32.mrf.mxu0
    %v344 = vadd.f32 0.0, %v343
    %v345 = vpop.f32.mrf.mxu0
    %v346 = vadd.f32 0.0, %v345
    %347 = vmatmul.bf16.gmra.mxu0 %v126
    %v348 = vpop.f32.mrf.mxu0
    %v349 = vadd.f32 0.0, %v348
    %v350 = vpop.f32.mrf.mxu0
    %v351 = vadd.f32 0.0, %v350
    %352 = vmatmul.bf16.gmra.mxu0 %v127
    %v353 = vpop.f32.mrf.mxu0
    %v354 = vadd.f32 0.0, %v353
    %v355 = vpop.f32.mrf.mxu0
    %v356 = vadd.f32 0.0, %v355
    %357 = vmatmul.bf16.gmra.mxu0 %v128
    %v358 = vpop.f32.mrf.mxu0
    %v359 = vadd.f32 0.0, %v358
    %v360 = vpop.f32.mrf.mxu0
    %v361 = vadd.f32 0.0, %v360
    %362 = vdwg.mxu0
    %363 = vmatpush.bf16.msra.mxu0 %v240
    %364 = vmatpush.bf16.msra.mxu0 %v237
    %365 = vmatpush.bf16.msra.mxu0 %v234
    %366 = vmatpush.bf16.msra.mxu0 %v231
    %367 = vmatpush.bf16.msra.mxu0 %v228
    %368 = vmatpush.bf16.msra.mxu0 %v225
    %369 = vmatpush.bf16.msra.mxu0 %v222
    %370 = vmatpush.bf16.msra.mxu0 %v219
    %371 = vmatmul.bf16.gmra.mxu0 %v121
    %v372 = vpop.f32.mrf.mxu0
    %v373 = vadd.f32 0.0, %v372
    %v374 = vpop.f32.mrf.mxu0
    %v375 = vadd.f32 0.0, %v374
    %376 = vmatmul.bf16.gmra.mxu0 %v122
    %v377 = vpop.f32.mrf.mxu0
    %v378 = vadd.f32 0.0, %v377
    %v379 = vpop.f32.mrf.mxu0
    %v380 = vadd.f32 0.0, %v379
    %381 = vmatmul.bf16.gmra.mxu0 %v123
    %v382 = vpop.f32.mrf.mxu0
    %v383 = vadd.f32 0.0, %v382
    %v384 = vpop.f32.mrf.mxu0
    %v385 = vadd.f32 0.0, %v384
    %386 = vmatmul.bf16.gmra.mxu0 %v124
    %v387 = vpop.f32.mrf.mxu0
    %v388 = vadd.f32 0.0, %v387
    %v389 = vpop.f32.mrf.mxu0
    %v390 = vadd.f32 0.0, %v389
    %391 = vmatmul.bf16.gmra.mxu0 %v125
    %v392 = vpop.f32.mrf.mxu0
    %v393 = vadd.f32 0.0, %v392
    %v394 = vpop.f32.mrf.mxu0
    %v395 = vadd.f32 0.0, %v394
    %396 = vmatmul.bf16.gmra.mxu0 %v126
    %v397 = vpop.f32.mrf.mxu0
    %v398 = vadd.f32 0.0, %v397
    %v399 = vpop.f32.mrf.mxu0
    %v400 = vadd.f32 0.0, %v399
    %401 = vmatmul.bf16.gmra.mxu0 %v127
    %v402 = vpop.f32.mrf.mxu0
    %v403 = vadd.f32 0.0, %v402
    %v404 = vpop.f32.mrf.mxu0
    %v405 = vadd.f32 0.0, %v404
    %406 = vmatmul.bf16.gmra.mxu0 %v128
    %v407 = vpop.f32.mrf.mxu0
    %v408 = vadd.f32 0.0, %v407
    %v409 = vpop.f32.mrf.mxu0
    %v410 = vadd.f32 0.0, %v409
    %411 = vdwg.mxu0
    %412 = vst [vmem:[%s7] sm:$0xff] %v275
    %413 = vst [vmem:[%s7 + $0x8] sm:$0xff] %v324
    %414 = vst [vmem:[%s7 + $0x10] sm:$0xff] %v373
    %415 = vst [vmem:[%s7 + $0x18] sm:$0xff] %v277
    %416 = vst [vmem:[%s7 + $0x20] sm:$0xff] %v326
    %417 = vst [vmem:[%s7 + $0x28] sm:$0xff] %v375
    %418 = vst [vmem:[%s7 + $0x30] sm:$0xff] %v280
    %419 = vst [vmem:[%s7 + $0x38] sm:$0xff] %v329
    %420 = vst [vmem:[%s7 + $0x40] sm:$0xff] %v378
    %421 = vst [vmem:[%s7 + $0x48] sm:$0xff] %v282
    %422 = vst [vmem:[%s7 + $0x50] sm:$0xff] %v331
    %423 = vst [vmem:[%s7 + $0x58] sm:$0xff] %v380
    %424 = vst [vmem:[%s7 + $0x60] sm:$0xff] %v285
    %425 = vst [vmem:[%s7 + $0x68] sm:$0xff] %v334
    %426 = vst [vmem:[%s7 + $0x70] sm:$0xff] %v383
    %427 = vst [vmem:[%s7 + $0x78] sm:$0xff] %v287
    %428 = vst [vmem:[%s7 + $0x80] sm:$0xff] %v336
    %429 = vst [vmem:[%s7 + $0x88] sm:$0xff] %v385
    %430 = vst [vmem:[%s7 + $0x90] sm:$0xff] %v290
    %431 = vst [vmem:[%s7 + $0x98] sm:$0xff] %v339
    %432 = vst [vmem:[%s7 + $0xa0] sm:$0xff] %v388
    %433 = vst [vmem:[%s7 + $0xa8] sm:$0xff] %v292
    %434 = vst [vmem:[%s7 + $0xb0] sm:$0xff] %v341
    %435 = vst [vmem:[%s7 + $0xb8] sm:$0xff] %v390
    %436 = vst [vmem:[%s7 + $0xc0] sm:$0xff] %v295
    %437 = vst [vmem:[%s7 + $0xc8] sm:$0xff] %v344
    %438 = vst [vmem:[%s7 + $0xd0] sm:$0xff] %v393
    %439 = vst [vmem:[%s7 + $0xd8] sm:$0xff] %v297
    %440 = vst [vmem:[%s7 + $0xe0] sm:$0xff] %v346
    %441 = vst [vmem:[%s7 + $0xe8] sm:$0xff] %v395
    %442 = vst [vmem:[%s7 + $0xf0] sm:$0xff] %v300
    %443 = vst [vmem:[%s7 + $0xf8] sm:$0xff] %v349
    %444 = vst [vmem:[%s7 + $0x100] sm:$0xff] %v398
    %445 = vst [vmem:[%s7 + $0x108] sm:$0xff] %v302
    %446 = vst [vmem:[%s7 + $0x110] sm:$0xff] %v351
    %447 = vst [vmem:[%s7 + $0x118] sm:$0xff] %v400
    %448 = vst [vmem:[%s7 + $0x120] sm:$0xff] %v305
    %449 = vst [vmem:[%s7 + $0x128] sm:$0xff] %v354
    %450 = vst [vmem:[%s7 + $0x130] sm:$0xff] %v403
    %451 = vst [vmem:[%s7 + $0x138] sm:$0xff] %v307
    %452 = vst [vmem:[%s7 + $0x140] sm:$0xff] %v356
    %453 = vst [vmem:[%s7 + $0x148] sm:$0xff] %v405
    %454 = vst [vmem:[%s7 + $0x150] sm:$0xff] %v310
    %455 = vst [vmem:[%s7 + $0x158] sm:$0xff] %v359
    %456 = vst [vmem:[%s7 + $0x160] sm:$0xff] %v408
    %457 = vst [vmem:[%s7 + $0x168] sm:$0xff] %v312
    %458 = vst [vmem:[%s7 + $0x170] sm:$0xff] %v361
    %459 = vst [vmem:[%s7 + $0x178] sm:$0xff] %v410
    %v460 = vmul.f32 %v275, 0.5
    %v461 = vmul.f32 %v277, 0.5
    %v462 = vmul.f32 %v280, 0.5
    %v463 = vmul.f32 %v282, 0.5
    %v464 = vmul.f32 %v285, 0.5
    %v465 = vmul.f32 %v287, 0.5
    %v466 = vmul.f32 %v290, 0.5
    %v467 = vmul.f32 %v292, 0.5
    %v468 = vmul.f32 %v295, 0.5
    %v469 = vmul.f32 %v297, 0.5
    %v470 = vmul.f32 %v300, 0.5
    %v471 = vmul.f32 %v302, 0.5
    %v472 = vmul.f32 %v305, 0.5
    %v473 = vmul.f32 %v307, 0.5
    %v474 = vmul.f32 %v310, 0.5
    %v475 = vmul.f32 %v312, 0.5
    %v476 = vld [vmem:[%s2] sm:$0xf]
    %v477 = vld [vmem:[%s2 + $0x4] sm:$0xf]
    %v478 = vld [vmem:[%s2 + $0x8] sm:$0xf]
    %v479 = vld [vmem:[%s2 + $0xc] sm:$0xf]
    %v480 = vld [vmem:[%s2 + $0x10] sm:$0xf]
    %v481 = vld [vmem:[%s2 + $0x14] sm:$0xf]
    %v482 = vld [vmem:[%s2 + $0x18] sm:$0xf]
    %v483 = vld [vmem:[%s2 + $0x1c] sm:$0xf]
    %v484 = vld [vmem:[%s2 + $0x20] sm:$0xf]
    %v485 = vld [vmem:[%s2 + $0x24] sm:$0xf]
    %v486 = vld [vmem:[%s2 + $0x28] sm:$0xf]
    %v487 = vld [vmem:[%s2 + $0x2c] sm:$0xf]
    %v488 = vld [vmem:[%s2 + $0x30] sm:$0xf]
    %v489 = vld [vmem:[%s2 + $0x34] sm:$0xf]
    %v490 = vld [vmem:[%s2 + $0x38] sm:$0xf]
    %v491 = vld [vmem:[%s2 + $0x3c] sm:$0xf]
    %v492 = vld [vmem:[#allocation2] sm:$0xff]
    %v493 = vld [vmem:[#allocation2 + $0x8] sm:$0xff]
    %v494 = vld [vmem:[#allocation2 + $0x10] sm:$0xff]
    %v495 = vld [vmem:[#allocation2 + $0x18] sm:$0xff]
    %v496 = vld [vmem:[#allocation2 + $0x20] sm:$0xff]
    %v497 = vld [vmem:[#allocation2 + $0x28] sm:$0xff]
    %v498 = vld [vmem:[#allocation2 + $0x30] sm:$0xff]
    %v499 = vld [vmem:[#allocation2 + $0x38] sm:$0xff]
    %v500 = vld [vmem:[#allocation2 + $0x40] sm:$0xff]
    %v501 = vld [vmem:[#allocation2 + $0x48] sm:$0xff]
    %v502 = vld [vmem:[#allocation2 + $0x50] sm:$0xff]
    %v503 = vld [vmem:[#allocation2 + $0x58] sm:$0xff]
    %v504 = vld [vmem:[#allocation2 + $0x60] sm:$0xff]
    %v505 = vld [vmem:[#allocation2 + $0x68] sm:$0xff]
    %v506 = vld [vmem:[#allocation2 + $0x70] sm:$0xff]
    %v507 = vld [vmem:[#allocation2 + $0x78] sm:$0xff]
    %v508 = vrot.slane %v324, 7
    %v509 = vrot.slane %v326, 7
    %v510 = vrot.slane %v329, 7
    %v511 = vrot.slane %v331, 7
    %v512 = vrot.slane %v334, 7
    %v513 = vrot.slane %v336, 7
    %v514 = vrot.slane %v339, 7
    %v515 = vrot.slane %v341, 7
    %v516 = vrot.slane %v344, 7
    %v517 = vrot.slane %v346, 7
    %v518 = vrot.slane %v349, 7
    %v519 = vrot.slane %v351, 7
    %v520 = vrot.slane %v354, 7
    %v521 = vrot.slane %v356, 7
    %v522 = vrot.slane %v359, 7
    %v523 = vrot.slane %v361, 7
    %v524 = vlaneseq
    %v525 = vshrl.u32 %v524, 7
    %vm526 = vcmp.lt.s32.totalorder %v525, 1
    %v527 = vsel %vm526, %v522, %v523
    %v528 = vsel %vm526, %v521, %v522
    %v529 = vsel %vm526, %v520, %v521
    %v530 = vsel %vm526, %v519, %v520
    %v531 = vsel %vm526, %v518, %v519
    %v532 = vsel %vm526, %v517, %v518
    %v533 = vsel %vm526, %v516, %v517
    %v534 = vsel %vm526, %v515, %v516
    %v535 = vsel %vm526, %v514, %v515
    %v536 = vsel %vm526, %v513, %v514
    %v537 = vsel %vm526, %v512, %v513
    %v538 = vsel %vm526, %v511, %v512
    %v539 = vsel %vm526, %v510, %v511
    %v540 = vsel %vm526, %v509, %v510
    %v541 = vsel %vm526, %v508, %v509
    %v542 = vsel %vm526, %v523, %v508
    %v543 = vmul.f32 %v492, %v542
    %v544 = vmul.f32 %v493, %v541
    %v545 = vmul.f32 %v494, %v540
    %v546 = vmul.f32 %v495, %v539
    %v547 = vmul.f32 %v496, %v538
    %v548 = vmul.f32 %v497, %v537
    %v549 = vmul.f32 %v498, %v536
    %v550 = vmul.f32 %v499, %v535
    %v551 = vmul.f32 %v500, %v534
    %v552 = vmul.f32 %v501, %v533
    %v553 = vmul.f32 %v502, %v532
    %v554 = vmul.f32 %v503, %v531
    %v555 = vmul.f32 %v504, %v530
    %v556 = vmul.f32 %v505, %v529
    %v557 = vmul.f32 %v506, %v528
    %v558 = vmul.f32 %v507, %v527
    %v559 = vadd.f32 %v543, 0.0
    %v560 = vadd.f32 %v544, 0.0
    %v561 = vadd.f32 %v545, 0.0
    %v562 = vadd.f32 %v546, 0.0
    %v563 = vadd.f32 %v547, 0.0
    %v564 = vadd.f32 %v548, 0.0
    %v565 = vadd.f32 %v549, 0.0
    %v566 = vadd.f32 %v550, 0.0
    %v567 = vadd.f32 %v551, 0.0
    %v568 = vadd.f32 %v552, 0.0
    %v569 = vadd.f32 %v553, 0.0
    %v570 = vadd.f32 %v554, 0.0
    %v571 = vadd.f32 %v555, 0.0
    %v572 = vadd.f32 %v556, 0.0
    %v573 = vadd.f32 %v557, 0.0
    %v574 = vadd.f32 %v558, 0.0
    %v575 = vrot.slane %v373, 7
    %v576 = vrot.slane %v375, 7
    %v577 = vrot.slane %v378, 7
    %v578 = vrot.slane %v380, 7
    %v579 = vrot.slane %v383, 7
    %v580 = vrot.slane %v385, 7
    %v581 = vrot.slane %v388, 7
    %v582 = vrot.slane %v390, 7
    %v583 = vrot.slane %v393, 7
    %v584 = vrot.slane %v395, 7
    %v585 = vrot.slane %v398, 7
    %v586 = vrot.slane %v400, 7
    %v587 = vrot.slane %v403, 7
    %v588 = vrot.slane %v405, 7
    %v589 = vrot.slane %v408, 7
    %v590 = vrot.slane %v410, 7
    %v591 = vsel %vm526, %v589, %v590
    %v592 = vsel %vm526, %v588, %v589
    %v593 = vsel %vm526, %v587, %v588
    %v594 = vsel %vm526, %v586, %v587
    %v595 = vsel %vm526, %v585, %v586
    %v596 = vsel %vm526, %v584, %v585
    %v597 = vsel %vm526, %v583, %v584
    %v598 = vsel %vm526, %v582, %v583
    %v599 = vsel %vm526, %v581, %v582
    %v600 = vsel %vm526, %v580, %v581
    %v601 = vsel %vm526, %v579, %v580
    %v602 = vsel %vm526, %v578, %v579
    %v603 = vsel %vm526, %v577, %v578
    %v604 = vsel %vm526, %v576, %v577
    %v605 = vsel %vm526, %v575, %v576
    %v606 = vsel %vm526, %v590, %v575
    %v607 = vmul.f32 %v492, %v606
    %v608 = vmul.f32 %v493, %v605
    %v609 = vmul.f32 %v494, %v604
    %v610 = vmul.f32 %v495, %v603
    %v611 = vmul.f32 %v496, %v602
    %v612 = vmul.f32 %v497, %v601
    %v613 = vmul.f32 %v498, %v600
    %v614 = vmul.f32 %v499, %v599
    %v615 = vmul.f32 %v500, %v598
    %v616 = vmul.f32 %v501, %v597
    %v617 = vmul.f32 %v502, %v596
    %v618 = vmul.f32 %v503, %v595
    %v619 = vmul.f32 %v504, %v594
    %v620 = vmul.f32 %v505, %v593
    %v621 = vmul.f32 %v506, %v592
    %v622 = vmul.f32 %v507, %v591
    %v623 = vadd.f32 %v607, 0.0
    %v624 = vadd.f32 %v608, 0.0
    %v625 = vadd.f32 %v609, 0.0
    %v626 = vadd.f32 %v610, 0.0
    %v627 = vadd.f32 %v611, 0.0
    %v628 = vadd.f32 %v612, 0.0
    %v629 = vadd.f32 %v613, 0.0
    %v630 = vadd.f32 %v614, 0.0
    %v631 = vadd.f32 %v615, 0.0
    %v632 = vadd.f32 %v616, 0.0
    %v633 = vadd.f32 %v617, 0.0
    %v634 = vadd.f32 %v618, 0.0
    %v635 = vadd.f32 %v619, 0.0
    %v636 = vadd.f32 %v620, 0.0
    %v637 = vadd.f32 %v621, 0.0
    %v638 = vadd.f32 %v622, 0.0
    %s639 = scalar_lea.vmem [#allocation2], 128
    %v640 = vld [vmem:[%s639] sm:$0xff]
    %v641 = vld [vmem:[%s639 + $0x8] sm:$0xff]
    %v642 = vld [vmem:[%s639 + $0x10] sm:$0xff]
    %v643 = vld [vmem:[%s639 + $0x18] sm:$0xff]
    %v644 = vld [vmem:[%s639 + $0x20] sm:$0xff]
    %v645 = vld [vmem:[%s639 + $0x28] sm:$0xff]
    %v646 = vld [vmem:[%s639 + $0x30] sm:$0xff]
    %v647 = vld [vmem:[%s639 + $0x38] sm:$0xff]
    %v648 = vld [vmem:[%s639 + $0x40] sm:$0xff]
    %v649 = vld [vmem:[%s639 + $0x48] sm:$0xff]
    %v650 = vld [vmem:[%s639 + $0x50] sm:$0xff]
    %v651 = vld [vmem:[%s639 + $0x58] sm:$0xff]
    %v652 = vld [vmem:[%s639 + $0x60] sm:$0xff]
    %v653 = vld [vmem:[%s639 + $0x68] sm:$0xff]
    %v654 = vld [vmem:[%s639 + $0x70] sm:$0xff]
    %v655 = vld [vmem:[%s639 + $0x78] sm:$0xff]
    %v656 = vrot.slane %v324, 6
    %v657 = vrot.slane %v326, 6
    %v658 = vrot.slane %v329, 6
    %v659 = vrot.slane %v331, 6
    %v660 = vrot.slane %v334, 6
    %v661 = vrot.slane %v336, 6
    %v662 = vrot.slane %v339, 6
    %v663 = vrot.slane %v341, 6
    %v664 = vrot.slane %v344, 6
    %v665 = vrot.slane %v346, 6
    %v666 = vrot.slane %v349, 6
    %v667 = vrot.slane %v351, 6
    %v668 = vrot.slane %v354, 6
    %v669 = vrot.slane %v356, 6
    %v670 = vrot.slane %v359, 6
    %v671 = vrot.slane %v361, 6
    %vm672 = vcmp.lt.s32.totalorder %v525, 2
    %v673 = vsel %vm672, %v670, %v671
    %v674 = vsel %vm672, %v669, %v670
    %v675 = vsel %vm672, %v668, %v669
    %v676 = vsel %vm672, %v667, %v668
    %v677 = vsel %vm672, %v666, %v667
    %v678 = vsel %vm672, %v665, %v666
    %v679 = vsel %vm672, %v664, %v665
    %v680 = vsel %vm672, %v663, %v664
    %v681 = vsel %vm672, %v662, %v663
    %v682 = vsel %vm672, %v661, %v662
    %v683 = vsel %vm672, %v660, %v661
    %v684 = vsel %vm672, %v659, %v660
    %v685 = vsel %vm672, %v658, %v659
    %v686 = vsel %vm672, %v657, %v658
    %v687 = vsel %vm672, %v656, %v657
    %v688 = vsel %vm672, %v671, %v656
    %v689 = vmul.f32 %v640, %v688
    %v690 = vmul.f32 %v641, %v687
    %v691 = vmul.f32 %v642, %v686
    %v692 = vmul.f32 %v643, %v685
    %v693 = vmul.f32 %v644, %v684
    %v694 = vmul.f32 %v645, %v683
    %v695 = vmul.f32 %v646, %v682
    %v696 = vmul.f32 %v647, %v681
    %v697 = vmul.f32 %v648, %v680
    %v698 = vmul.f32 %v649, %v679
    %v699 = vmul.f32 %v650, %v678
    %v700 = vmul.f32 %v651, %v677
    %v701 = vmul.f32 %v652, %v676
    %v702 = vmul.f32 %v653, %v675
    %v703 = vmul.f32 %v654, %v674
    %v704 = vmul.f32 %v655, %v673
    %v705 = vadd.f32 %v559, %v689
    %v706 = vadd.f32 %v560, %v690
    %v707 = vadd.f32 %v561, %v691
    %v708 = vadd.f32 %v562, %v692
    %v709 = vadd.f32 %v563, %v693
    %v710 = vadd.f32 %v564, %v694
    %v711 = vadd.f32 %v565, %v695
    %v712 = vadd.f32 %v566, %v696
    %v713 = vadd.f32 %v567, %v697
    %v714 = vadd.f32 %v568, %v698
    %v715 = vadd.f32 %v569, %v699
    %v716 = vadd.f32 %v570, %v700
    %v717 = vadd.f32 %v571, %v701
    %v718 = vadd.f32 %v572, %v702
    %v719 = vadd.f32 %v573, %v703
    %v720 = vadd.f32 %v574, %v704
    %v721 = vrot.slane %v373, 6
    %v722 = vrot.slane %v375, 6
    %v723 = vrot.slane %v378, 6
    %v724 = vrot.slane %v380, 6
    %v725 = vrot.slane %v383, 6
    %v726 = vrot.slane %v385, 6
    %v727 = vrot.slane %v388, 6
    %v728 = vrot.slane %v390, 6
    %v729 = vrot.slane %v393, 6
    %v730 = vrot.slane %v395, 6
    %v731 = vrot.slane %v398, 6
    %v732 = vrot.slane %v400, 6
    %v733 = vrot.slane %v403, 6
    %v734 = vrot.slane %v405, 6
    %v735 = vrot.slane %v408, 6
    %v736 = vrot.slane %v410, 6
    %v737 = vsel %vm672, %v735, %v736
    %v738 = vsel %vm672, %v734, %v735
    %v739 = vsel %vm672, %v733, %v734
    %v740 = vsel %vm672, %v732, %v733
    %v741 = vsel %vm672, %v731, %v732
    %v742 = vsel %vm672, %v730, %v731
    %v743 = vsel %vm672, %v729, %v730
    %v744 = vsel %vm672, %v728, %v729
    %v745 = vsel %vm672, %v727, %v728
    %v746 = vsel %vm672, %v726, %v727
    %v747 = vsel %vm672, %v725, %v726
    %v748 = vsel %vm672, %v724, %v725
    %v749 = vsel %vm672, %v723, %v724
    %v750 = vsel %vm672, %v722, %v723
    %v751 = vsel %vm672, %v721, %v722
    %v752 = vsel %vm672, %v736, %v721
    %v753 = vmul.f32 %v640, %v752
    %v754 = vmul.f32 %v641, %v751
    %v755 = vmul.f32 %v642, %v750
    %v756 = vmul.f32 %v643, %v749
    %v757 = vmul.f32 %v644, %v748
    %v758 = vmul.f32 %v645, %v747
    %v759 = vmul.f32 %v646, %v746
    %v760 = vmul.f32 %v647, %v745
    %v761 = vmul.f32 %v648, %v744
    %v762 = vmul.f32 %v649, %v743
    %v763 = vmul.f32 %v650, %v742
    %v764 = vmul.f32 %v651, %v741
    %v765 = vmul.f32 %v652, %v740
    %v766 = vmul.f32 %v653, %v739
    %v767 = vmul.f32 %v654, %v738
    %v768 = vmul.f32 %v655, %v737
    %v769 = vadd.f32 %v623, %v753
    %v770 = vadd.f32 %v624, %v754
    %v771 = vadd.f32 %v625, %v755
    %v772 = vadd.f32 %v626, %v756
    %v773 = vadd.f32 %v627, %v757
    %v774 = vadd.f32 %v628, %v758
    %v775 = vadd.f32 %v629, %v759
    %v776 = vadd.f32 %v630, %v760
    %v777 = vadd.f32 %v631, %v761
    %v778 = vadd.f32 %v632, %v762
    %v779 = vadd.f32 %v633, %v763
    %v780 = vadd.f32 %v634, %v764
    %v781 = vadd.f32 %v635, %v765
    %v782 = vadd.f32 %v636, %v766
    %v783 = vadd.f32 %v637, %v767
    %v784 = vadd.f32 %v638, %v768
    %s785 = scalar_lea.vmem [#allocation2], 256
    %v786 = vld [vmem:[%s785] sm:$0xff]
    %v787 = vld [vmem:[%s785 + $0x8] sm:$0xff]
    %v788 = vld [vmem:[%s785 + $0x10] sm:$0xff]
    %v789 = vld [vmem:[%s785 + $0x18] sm:$0xff]
    %v790 = vld [vmem:[%s785 + $0x20] sm:$0xff]
    %v791 = vld [vmem:[%s785 + $0x28] sm:$0xff]
    %v792 = vld [vmem:[%s785 + $0x30] sm:$0xff]
    %v793 = vld [vmem:[%s785 + $0x38] sm:$0xff]
    %v794 = vld [vmem:[%s785 + $0x40] sm:$0xff]
    %v795 = vld [vmem:[%s785 + $0x48] sm:$0xff]
    %v796 = vld [vmem:[%s785 + $0x50] sm:$0xff]
    %v797 = vld [vmem:[%s785 + $0x58] sm:$0xff]
    %v798 = vld [vmem:[%s785 + $0x60] sm:$0xff]
    %v799 = vld [vmem:[%s785 + $0x68] sm:$0xff]
    %v800 = vld [vmem:[%s785 + $0x70] sm:$0xff]
    %v801 = vld [vmem:[%s785 + $0x78] sm:$0xff]
    %v802 = vrot.slane %v324, 5
    %v803 = vrot.slane %v326, 5
    %v804 = vrot.slane %v329, 5
    %v805 = vrot.slane %v331, 5
    %v806 = vrot.slane %v334, 5
    %v807 = vrot.slane %v336, 5
    %v808 = vrot.slane %v339, 5
    %v809 = vrot.slane %v341, 5
    %v810 = vrot.slane %v344, 5
    %v811 = vrot.slane %v346, 5
    %v812 = vrot.slane %v349, 5
    %v813 = vrot.slane %v351, 5
    %v814 = vrot.slane %v354, 5
    %v815 = vrot.slane %v356, 5
    %v816 = vrot.slane %v359, 5
    %v817 = vrot.slane %v361, 5
    %vm818 = vcmp.lt.s32.totalorder %v525, 3
    %v819 = vsel %vm818, %v816, %v817
    %v820 = vsel %vm818, %v815, %v816
    %v821 = vsel %vm818, %v814, %v815
    %v822 = vsel %vm818, %v813, %v814
    %v823 = vsel %vm818, %v812, %v813
    %v824 = vsel %vm818, %v811, %v812
    %v825 = vsel %vm818, %v810, %v811
    %v826 = vsel %vm818, %v809, %v810
    %v827 = vsel %vm818, %v808, %v809
    %v828 = vsel %vm818, %v807, %v808
    %v829 = vsel %vm818, %v806, %v807
    %v830 = vsel %vm818, %v805, %v806
    %v831 = vsel %vm818, %v804, %v805
    %v832 = vsel %vm818, %v803, %v804
    %v833 = vsel %vm818, %v802, %v803
    %v834 = vsel %vm818, %v817, %v802
    %v835 = vmul.f32 %v786, %v834
    %v836 = vmul.f32 %v787, %v833
    %v837 = vmul.f32 %v788, %v832
    %v838 = vmul.f32 %v789, %v831
    %v839 = vmul.f32 %v790, %v830
    %v840 = vmul.f32 %v791, %v829
    %v841 = vmul.f32 %v792, %v828
    %v842 = vmul.f32 %v793, %v827
    %v843 = vmul.f32 %v794, %v826
    %v844 = vmul.f32 %v795, %v825
    %v845 = vmul.f32 %v796, %v824
    %v846 = vmul.f32 %v797, %v823
    %v847 = vmul.f32 %v798, %v822
    %v848 = vmul.f32 %v799, %v821
    %v849 = vmul.f32 %v800, %v820
    %v850 = vmul.f32 %v801, %v819
    %v851 = vadd.f32 %v705, %v835
    %v852 = vadd.f32 %v706, %v836
    %v853 = vadd.f32 %v707, %v837
    %v854 = vadd.f32 %v708, %v838
    %v855 = vadd.f32 %v709, %v839
    %v856 = vadd.f32 %v710, %v840
    %v857 = vadd.f32 %v711, %v841
    %v858 = vadd.f32 %v712, %v842
    %v859 = vadd.f32 %v713, %v843
    %v860 = vadd.f32 %v714, %v844
    %v861 = vadd.f32 %v715, %v845
    %v862 = vadd.f32 %v716, %v846
    %v863 = vadd.f32 %v717, %v847
    %v864 = vadd.f32 %v718, %v848
    %v865 = vadd.f32 %v719, %v849
    %v866 = vadd.f32 %v720, %v850
    %v867 = vrot.slane %v373, 5
    %v868 = vrot.slane %v375, 5
    %v869 = vrot.slane %v378, 5
    %v870 = vrot.slane %v380, 5
    %v871 = vrot.slane %v383, 5
    %v872 = vrot.slane %v385, 5
    %v873 = vrot.slane %v388, 5
    %v874 = vrot.slane %v390, 5
    %v875 = vrot.slane %v393, 5
    %v876 = vrot.slane %v395, 5
    %v877 = vrot.slane %v398, 5
    %v878 = vrot.slane %v400, 5
    %v879 = vrot.slane %v403, 5
    %v880 = vrot.slane %v405, 5
    %v881 = vrot.slane %v408, 5
    %v882 = vrot.slane %v410, 5
    %v883 = vsel %vm818, %v881, %v882
    %v884 = vsel %vm818, %v880, %v881
    %v885 = vsel %vm818, %v879, %v880
    %v886 = vsel %vm818, %v878, %v879
    %v887 = vsel %vm818, %v877, %v878
    %v888 = vsel %vm818, %v876, %v877
    %v889 = vsel %vm818, %v875, %v876
    %v890 = vsel %vm818, %v874, %v875
    %v891 = vsel %vm818, %v873, %v874
    %v892 = vsel %vm818, %v872, %v873
    %v893 = vsel %vm818, %v871, %v872
    %v894 = vsel %vm818, %v870, %v871
    %v895 = vsel %vm818, %v869, %v870
    %v896 = vsel %vm818, %v868, %v869
    %v897 = vsel %vm818, %v867, %v868
    %v898 = vsel %vm818, %v882, %v867
    %v899 = vmul.f32 %v786, %v898
    %v900 = vmul.f32 %v787, %v897
    %v901 = vmul.f32 %v788, %v896
    %v902 = vmul.f32 %v789, %v895
    %v903 = vmul.f32 %v790, %v894
    %v904 = vmul.f32 %v791, %v893
    %v905 = vmul.f32 %v792, %v892
    %v906 = vmul.f32 %v793, %v891
    %v907 = vmul.f32 %v794, %v890
    %v908 = vmul.f32 %v795, %v889
    %v909 = vmul.f32 %v796, %v888
    %v910 = vmul.f32 %v797, %v887
    %v911 = vmul.f32 %v798, %v886
    %v912 = vmul.f32 %v799, %v885
    %v913 = vmul.f32 %v800, %v884
    %v914 = vmul.f32 %v801, %v883
    %v915 = vadd.f32 %v769, %v899
    %v916 = vadd.f32 %v770, %v900
    %v917 = vadd.f32 %v771, %v901
    %v918 = vadd.f32 %v772, %v902
    %v919 = vadd.f32 %v773, %v903
    %v920 = vadd.f32 %v774, %v904
    %v921 = vadd.f32 %v775, %v905
    %v922 = vadd.f32 %v776, %v906
    %v923 = vadd.f32 %v777, %v907
    %v924 = vadd.f32 %v778, %v908
    %v925 = vadd.f32 %v779, %v909
    %v926 = vadd.f32 %v780, %v910
    %v927 = vadd.f32 %v781, %v911
    %v928 = vadd.f32 %v782, %v912
    %v929 = vadd.f32 %v783, %v913
    %v930 = vadd.f32 %v784, %v914
    %v931 = vmul.f32 %v460, %v851
    %v932 = vmul.f32 %v461, %v852
    %v933 = vmul.f32 %v462, %v853
    %v934 = vmul.f32 %v463, %v854
    %v935 = vmul.f32 %v464, %v855
    %v936 = vmul.f32 %v465, %v856
    %v937 = vmul.f32 %v466, %v857
    %v938 = vmul.f32 %v467, %v858
    %v939 = vmul.f32 %v468, %v859
    %v940 = vmul.f32 %v469, %v860
    %v941 = vmul.f32 %v470, %v861
    %v942 = vmul.f32 %v471, %v862
    %v943 = vmul.f32 %v472, %v863
    %v944 = vmul.f32 %v473, %v864
    %v945 = vmul.f32 %v474, %v865
    %v946 = vmul.f32 %v475, %v866
    %v947 = vpack.c.bf16 %v932, %v931
    %v948 = vpack.c.bf16 %v934, %v933
    %v949 = vpack.c.bf16 %v936, %v935
    %v950 = vpack.c.bf16 %v938, %v937
    %v951 = vpack.c.bf16 %v940, %v939
    %v952 = vpack.c.bf16 %v942, %v941
    %v953 = vpack.c.bf16 %v944, %v943
    %v954 = vpack.c.bf16 %v946, %v945
    %v971 = vunpack.c.l.b16 %v476
    %v972 = vunpack.c.l.b16 %v477
    %v973 = vunpack.c.l.b16 %v478
    %v974 = vunpack.c.l.b16 %v479
    %v975 = vunpack.c.l.b16 %v480
    %v976 = vunpack.c.l.b16 %v481
    %v977 = vunpack.c.l.b16 %v482
    %v978 = vunpack.c.l.b16 %v483
    %v979 = vunpack.c.l.b16 %v484
    %v980 = vunpack.c.l.b16 %v485
    %v981 = vunpack.c.l.b16 %v486
    %v982 = vunpack.c.l.b16 %v487
    %v983 = vunpack.c.l.b16 %v488
    %v984 = vunpack.c.l.b16 %v489
    %v985 = vunpack.c.l.b16 %v490
    %v986 = vunpack.c.l.b16 %v491
    %v987 = vpack.c.b16 %v972, %v971
    %v988 = vpack.c.b16 %v974, %v973
    %v989 = vpack.c.b16 %v976, %v975
    %v990 = vpack.c.b16 %v978, %v977
    %v991 = vpack.c.b16 %v980, %v979
    %v992 = vpack.c.b16 %v982, %v981
    %v993 = vpack.c.b16 %v984, %v983
    %v994 = vpack.c.b16 %v986, %v985
    %1003 = vmatpush.bf16.msra.mxu0 %v994
    %1004 = vmatpush.bf16.msra.mxu0 %v993
    %1005 = vmatpush.bf16.msra.mxu0 %v992
    %1006 = vmatpush.bf16.msra.mxu0 %v991
    %1007 = vmatpush.bf16.msra.mxu0 %v990
    %1008 = vmatpush.bf16.msra.mxu0 %v989
    %1009 = vmatpush.bf16.msra.mxu0 %v988
    %1010 = vmatpush.bf16.msra.mxu0 %v987
    %1011 = vmatmul.bf16.gmra.mxu0 %v947
    %v1012 = vpop.f32.mrf.mxu0
    %v1013 = vadd.f32 0.0, %v1012
    %v1014 = vpop.f32.mrf.mxu0
    %v1015 = vadd.f32 0.0, %v1014
    %1016 = vmatmul.bf16.gmra.mxu0 %v948
    %v1017 = vpop.f32.mrf.mxu0
    %v1018 = vadd.f32 0.0, %v1017
    %v1019 = vpop.f32.mrf.mxu0
    %v1020 = vadd.f32 0.0, %v1019
    %1021 = vmatmul.bf16.gmra.mxu0 %v949
    %v1022 = vpop.f32.mrf.mxu0
    %v1023 = vadd.f32 0.0, %v1022
    %v1024 = vpop.f32.mrf.mxu0
    %v1025 = vadd.f32 0.0, %v1024
    %1026 = vmatmul.bf16.gmra.mxu0 %v950
    %v1027 = vpop.f32.mrf.mxu0
    %v1028 = vadd.f32 0.0, %v1027
    %v1029 = vpop.f32.mrf.mxu0
    %v1030 = vadd.f32 0.0, %v1029
    %1031 = vmatmul.bf16.gmra.mxu0 %v951
    %v1032 = vpop.f32.mrf.mxu0
    %v1033 = vadd.f32 0.0, %v1032
    %v1034 = vpop.f32.mrf.mxu0
    %v1035 = vadd.f32 0.0, %v1034
    %1036 = vmatmul.bf16.gmra.mxu0 %v952
    %v1037 = vpop.f32.mrf.mxu0
    %v1038 = vadd.f32 0.0, %v1037
    %v1039 = vpop.f32.mrf.mxu0
    %v1040 = vadd.f32 0.0, %v1039
    %1041 = vmatmul.bf16.gmra.mxu0 %v953
    %v1042 = vpop.f32.mrf.mxu0
    %v1043 = vadd.f32 0.0, %v1042
    %v1044 = vpop.f32.mrf.mxu0
    %v1045 = vadd.f32 0.0, %v1044
    %1046 = vmatmul.bf16.gmra.mxu0 %v954
    %v1047 = vpop.f32.mrf.mxu0
    %v1048 = vadd.f32 0.0, %v1047
    %v1049 = vpop.f32.mrf.mxu0
    %v1050 = vadd.f32 0.0, %v1049
    %1051 = vdwg.mxu0
    %v1052 = vmul.f32 %v460, %v324
    %v1053 = vmul.f32 %v461, %v326
    %v1054 = vmul.f32 %v462, %v329
    %v1055 = vmul.f32 %v463, %v331
    %v1056 = vmul.f32 %v464, %v334
    %v1057 = vmul.f32 %v465, %v336
    %v1058 = vmul.f32 %v466, %v339
    %v1059 = vmul.f32 %v467, %v341
    %v1060 = vmul.f32 %v468, %v344
    %v1061 = vmul.f32 %v469, %v346
    %v1062 = vmul.f32 %v470, %v349
    %v1063 = vmul.f32 %v471, %v351
    %v1064 = vmul.f32 %v472, %v354
    %v1065 = vmul.f32 %v473, %v356
    %v1066 = vmul.f32 %v474, %v359
    %v1067 = vmul.f32 %v475, %v361
    %v1068 = vpack.c.bf16 %v1053, %v1052
    %v1069 = vpack.c.bf16 %v1055, %v1054
    %v1070 = vpack.c.bf16 %v1057, %v1056
    %v1071 = vpack.c.bf16 %v1059, %v1058
    %v1072 = vpack.c.bf16 %v1061, %v1060
    %v1073 = vpack.c.bf16 %v1063, %v1062
    %v1074 = vpack.c.bf16 %v1065, %v1064
    %v1075 = vpack.c.bf16 %v1067, %v1066
    %1076 = vmatpush.bf16.msra.mxu0 %v994
    %1077 = vmatpush.bf16.msra.mxu0 %v993
    %1078 = vmatpush.bf16.msra.mxu0 %v992
    %1079 = vmatpush.bf16.msra.mxu0 %v991
    %1080 = vmatpush.bf16.msra.mxu0 %v990
    %1081 = vmatpush.bf16.msra.mxu0 %v989
    %1082 = vmatpush.bf16.msra.mxu0 %v988
    %1083 = vmatpush.bf16.msra.mxu0 %v987
    %1084 = vmatmul.bf16.gmra.mxu0 %v1068
    %v1085 = vpop.f32.mrf.mxu0
    %v1086 = vadd.f32 0.0, %v1085
    %v1087 = vpop.f32.mrf.mxu0
    %v1088 = vadd.f32 0.0, %v1087
    %1089 = vmatmul.bf16.gmra.mxu0 %v1069
    %v1090 = vpop.f32.mrf.mxu0
    %v1091 = vadd.f32 0.0, %v1090
    %v1092 = vpop.f32.mrf.mxu0
    %v1093 = vadd.f32 0.0, %v1092
    %1094 = vmatmul.bf16.gmra.mxu0 %v1070
    %v1095 = vpop.f32.mrf.mxu0
    %v1096 = vadd.f32 0.0, %v1095
    %v1097 = vpop.f32.mrf.mxu0
    %v1098 = vadd.f32 0.0, %v1097
    %1099 = vmatmul.bf16.gmra.mxu0 %v1071
    %v1100 = vpop.f32.mrf.mxu0
    %v1101 = vadd.f32 0.0, %v1100
    %v1102 = vpop.f32.mrf.mxu0
    %v1103 = vadd.f32 0.0, %v1102
    %1104 = vmatmul.bf16.gmra.mxu0 %v1072
    %v1105 = vpop.f32.mrf.mxu0
    %v1106 = vadd.f32 0.0, %v1105
    %v1107 = vpop.f32.mrf.mxu0
    %v1108 = vadd.f32 0.0, %v1107
    %1109 = vmatmul.bf16.gmra.mxu0 %v1073
    %v1110 = vpop.f32.mrf.mxu0
    %v1111 = vadd.f32 0.0, %v1110
    %v1112 = vpop.f32.mrf.mxu0
    %v1113 = vadd.f32 0.0, %v1112
    %1114 = vmatmul.bf16.gmra.mxu0 %v1074
    %v1115 = vpop.f32.mrf.mxu0
    %v1116 = vadd.f32 0.0, %v1115
    %v1117 = vpop.f32.mrf.mxu0
    %v1118 = vadd.f32 0.0, %v1117
    %1119 = vmatmul.bf16.gmra.mxu0 %v1075
    %v1120 = vpop.f32.mrf.mxu0
    %v1121 = vadd.f32 0.0, %v1120
    %v1122 = vpop.f32.mrf.mxu0
    %v1123 = vadd.f32 0.0, %v1122
    %1124 = vdwg.mxu0
    %s1125 = scalar_lea.vmem [#allocation2], 384
    %v1126 = vld [vmem:[%s1125] sm:$0xff]
    %v1127 = vld [vmem:[%s1125 + $0x8] sm:$0xff]
    %v1128 = vld [vmem:[%s1125 + $0x10] sm:$0xff]
    %v1129 = vld [vmem:[%s1125 + $0x18] sm:$0xff]
    %v1130 = vld [vmem:[%s1125 + $0x20] sm:$0xff]
    %v1131 = vld [vmem:[%s1125 + $0x28] sm:$0xff]
    %v1132 = vld [vmem:[%s1125 + $0x30] sm:$0xff]
    %v1133 = vld [vmem:[%s1125 + $0x38] sm:$0xff]
    %v1134 = vld [vmem:[%s1125 + $0x40] sm:$0xff]
    %v1135 = vld [vmem:[%s1125 + $0x48] sm:$0xff]
    %v1136 = vld [vmem:[%s1125 + $0x50] sm:$0xff]
    %v1137 = vld [vmem:[%s1125 + $0x58] sm:$0xff]
    %v1138 = vld [vmem:[%s1125 + $0x60] sm:$0xff]
    %v1139 = vld [vmem:[%s1125 + $0x68] sm:$0xff]
    %v1140 = vld [vmem:[%s1125 + $0x70] sm:$0xff]
    %v1141 = vld [vmem:[%s1125 + $0x78] sm:$0xff]
    %v1142 = vrot.slane %v324, 1
    %v1143 = vrot.slane %v326, 1
    %v1144 = vrot.slane %v329, 1
    %v1145 = vrot.slane %v331, 1
    %v1146 = vrot.slane %v334, 1
    %v1147 = vrot.slane %v336, 1
    %v1148 = vrot.slane %v339, 1
    %v1149 = vrot.slane %v341, 1
    %v1150 = vrot.slane %v344, 1
    %v1151 = vrot.slane %v346, 1
    %v1152 = vrot.slane %v349, 1
    %v1153 = vrot.slane %v351, 1
    %v1154 = vrot.slane %v354, 1
    %v1155 = vrot.slane %v356, 1
    %v1156 = vrot.slane %v359, 1
    %v1157 = vrot.slane %v361, 1
    %vm1158 = vcmp.lt.s32.totalorder %v525, 7
    %v1159 = vsel %vm1158, %v1156, %v1157
    %v1160 = vsel %vm1158, %v1155, %v1156
    %v1161 = vsel %vm1158, %v1154, %v1155
    %v1162 = vsel %vm1158, %v1153, %v1154
    %v1163 = vsel %vm1158, %v1152, %v1153
    %v1164 = vsel %vm1158, %v1151, %v1152
    %v1165 = vsel %vm1158, %v1150, %v1151
    %v1166 = vsel %vm1158, %v1149, %v1150
    %v1167 = vsel %vm1158, %v1148, %v1149
    %v1168 = vsel %vm1158, %v1147, %v1148
    %v1169 = vsel %vm1158, %v1146, %v1147
    %v1170 = vsel %vm1158, %v1145, %v1146
    %v1171 = vsel %vm1158, %v1144, %v1145
    %v1172 = vsel %vm1158, %v1143, %v1144
    %v1173 = vsel %vm1158, %v1142, %v1143
    %v1174 = vsel %vm1158, %v1157, %v1142
    %v1175 = vmul.f32 %v1126, %v1173
    %v1176 = vmul.f32 %v1127, %v1172
    %v1177 = vmul.f32 %v1128, %v1171
    %v1178 = vmul.f32 %v1129, %v1170
    %v1179 = vmul.f32 %v1130, %v1169
    %v1180 = vmul.f32 %v1131, %v1168
    %v1181 = vmul.f32 %v1132, %v1167
    %v1182 = vmul.f32 %v1133, %v1166
    %v1183 = vmul.f32 %v1134, %v1165
    %v1184 = vmul.f32 %v1135, %v1164
    %v1185 = vmul.f32 %v1136, %v1163
    %v1186 = vmul.f32 %v1137, %v1162
    %v1187 = vmul.f32 %v1138, %v1161
    %v1188 = vmul.f32 %v1139, %v1160
    %v1189 = vmul.f32 %v1140, %v1159
    %v1190 = vmul.f32 %v1141, %v1174
    %v1191 = vadd.f32 %v1175, 0.0
    %v1192 = vadd.f32 %v1176, 0.0
    %v1193 = vadd.f32 %v1177, 0.0
    %v1194 = vadd.f32 %v1178, 0.0
    %v1195 = vadd.f32 %v1179, 0.0
    %v1196 = vadd.f32 %v1180, 0.0
    %v1197 = vadd.f32 %v1181, 0.0
    %v1198 = vadd.f32 %v1182, 0.0
    %v1199 = vadd.f32 %v1183, 0.0
    %v1200 = vadd.f32 %v1184, 0.0
    %v1201 = vadd.f32 %v1185, 0.0
    %v1202 = vadd.f32 %v1186, 0.0
    %v1203 = vadd.f32 %v1187, 0.0
    %v1204 = vadd.f32 %v1188, 0.0
    %v1205 = vadd.f32 %v1189, 0.0
    %v1206 = vadd.f32 %v1190, 0.0
    %v1207 = vrot.slane %v373, 1
    %v1208 = vrot.slane %v375, 1
    %v1209 = vrot.slane %v378, 1
    %v1210 = vrot.slane %v380, 1
    %v1211 = vrot.slane %v383, 1
    %v1212 = vrot.slane %v385, 1
    %v1213 = vrot.slane %v388, 1
    %v1214 = vrot.slane %v390, 1
    %v1215 = vrot.slane %v393, 1
    %v1216 = vrot.slane %v395, 1
    %v1217 = vrot.slane %v398, 1
    %v1218 = vrot.slane %v400, 1
    %v1219 = vrot.slane %v403, 1
    %v1220 = vrot.slane %v405, 1
    %v1221 = vrot.slane %v408, 1
    %v1222 = vrot.slane %v410, 1
    %v1223 = vsel %vm1158, %v1221, %v1222
    %v1224 = vsel %vm1158, %v1220, %v1221
    %v1225 = vsel %vm1158, %v1219, %v1220
    %v1226 = vsel %vm1158, %v1218, %v1219
    %v1227 = vsel %vm1158, %v1217, %v1218
    %v1228 = vsel %vm1158, %v1216, %v1217
    %v1229 = vsel %vm1158, %v1215, %v1216
    %v1230 = vsel %vm1158, %v1214, %v1215
    %v1231 = vsel %vm1158, %v1213, %v1214
    %v1232 = vsel %vm1158, %v1212, %v1213
    %v1233 = vsel %vm1158, %v1211, %v1212
    %v1234 = vsel %vm1158, %v1210, %v1211
    %v1235 = vsel %vm1158, %v1209, %v1210
    %v1236 = vsel %vm1158, %v1208, %v1209
    %v1237 = vsel %vm1158, %v1207, %v1208
    %v1238 = vsel %vm1158, %v1222, %v1207
    %v1239 = vmul.f32 %v1126, %v1237
    %v1240 = vmul.f32 %v1127, %v1236
    %v1241 = vmul.f32 %v1128, %v1235
    %v1242 = vmul.f32 %v1129, %v1234
    %v1243 = vmul.f32 %v1130, %v1233
    %v1244 = vmul.f32 %v1131, %v1232
    %v1245 = vmul.f32 %v1132, %v1231
    %v1246 = vmul.f32 %v1133, %v1230
    %v1247 = vmul.f32 %v1134, %v1229
    %v1248 = vmul.f32 %v1135, %v1228
    %v1249 = vmul.f32 %v1136, %v1227
    %v1250 = vmul.f32 %v1137, %v1226
    %v1251 = vmul.f32 %v1138, %v1225
    %v1252 = vmul.f32 %v1139, %v1224
    %v1253 = vmul.f32 %v1140, %v1223
    %v1254 = vmul.f32 %v1141, %v1238
    %v1255 = vadd.f32 %v1239, 0.0
    %v1256 = vadd.f32 %v1240, 0.0
    %v1257 = vadd.f32 %v1241, 0.0
    %v1258 = vadd.f32 %v1242, 0.0
    %v1259 = vadd.f32 %v1243, 0.0
    %v1260 = vadd.f32 %v1244, 0.0
    %v1261 = vadd.f32 %v1245, 0.0
    %v1262 = vadd.f32 %v1246, 0.0
    %v1263 = vadd.f32 %v1247, 0.0
    %v1264 = vadd.f32 %v1248, 0.0
    %v1265 = vadd.f32 %v1249, 0.0
    %v1266 = vadd.f32 %v1250, 0.0
    %v1267 = vadd.f32 %v1251, 0.0
    %v1268 = vadd.f32 %v1252, 0.0
    %v1269 = vadd.f32 %v1253, 0.0
    %v1270 = vadd.f32 %v1254, 0.0
    %s1271 = scalar_lea.vmem [#allocation2], 512
    %v1272 = vld [vmem:[%s1271] sm:$0xff]
    %v1273 = vld [vmem:[%s1271 + $0x8] sm:$0xff]
    %v1274 = vld [vmem:[%s1271 + $0x10] sm:$0xff]
    %v1275 = vld [vmem:[%s1271 + $0x18] sm:$0xff]
    %v1276 = vld [vmem:[%s1271 + $0x20] sm:$0xff]
    %v1277 = vld [vmem:[%s1271 + $0x28] sm:$0xff]
    %v1278 = vld [vmem:[%s1271 + $0x30] sm:$0xff]
    %v1279 = vld [vmem:[%s1271 + $0x38] sm:$0xff]
    %v1280 = vld [vmem:[%s1271 + $0x40] sm:$0xff]
    %v1281 = vld [vmem:[%s1271 + $0x48] sm:$0xff]
    %v1282 = vld [vmem:[%s1271 + $0x50] sm:$0xff]
    %v1283 = vld [vmem:[%s1271 + $0x58] sm:$0xff]
    %v1284 = vld [vmem:[%s1271 + $0x60] sm:$0xff]
    %v1285 = vld [vmem:[%s1271 + $0x68] sm:$0xff]
    %v1286 = vld [vmem:[%s1271 + $0x70] sm:$0xff]
    %v1287 = vld [vmem:[%s1271 + $0x78] sm:$0xff]
    %v1288 = vrot.slane %v324, 2
    %v1289 = vrot.slane %v326, 2
    %v1290 = vrot.slane %v329, 2
    %v1291 = vrot.slane %v331, 2
    %v1292 = vrot.slane %v334, 2
    %v1293 = vrot.slane %v336, 2
    %v1294 = vrot.slane %v339, 2
    %v1295 = vrot.slane %v341, 2
    %v1296 = vrot.slane %v344, 2
    %v1297 = vrot.slane %v346, 2
    %v1298 = vrot.slane %v349, 2
    %v1299 = vrot.slane %v351, 2
    %v1300 = vrot.slane %v354, 2
    %v1301 = vrot.slane %v356, 2
    %v1302 = vrot.slane %v359, 2
    %v1303 = vrot.slane %v361, 2
    %vm1304 = vcmp.lt.s32.totalorder %v525, 6
    %v1305 = vsel %vm1304, %v1302, %v1303
    %v1306 = vsel %vm1304, %v1301, %v1302
    %v1307 = vsel %vm1304, %v1300, %v1301
    %v1308 = vsel %vm1304, %v1299, %v1300
    %v1309 = vsel %vm1304, %v1298, %v1299
    %v1310 = vsel %vm1304, %v1297, %v1298
    %v1311 = vsel %vm1304, %v1296, %v1297
    %v1312 = vsel %vm1304, %v1295, %v1296
    %v1313 = vsel %vm1304, %v1294, %v1295
    %v1314 = vsel %vm1304, %v1293, %v1294
    %v1315 = vsel %vm1304, %v1292, %v1293
    %v1316 = vsel %vm1304, %v1291, %v1292
    %v1317 = vsel %vm1304, %v1290, %v1291
    %v1318 = vsel %vm1304, %v1289, %v1290
    %v1319 = vsel %vm1304, %v1288, %v1289
    %v1320 = vsel %vm1304, %v1303, %v1288
    %v1321 = vmul.f32 %v1272, %v1319
    %v1322 = vmul.f32 %v1273, %v1318
    %v1323 = vmul.f32 %v1274, %v1317
    %v1324 = vmul.f32 %v1275, %v1316
    %v1325 = vmul.f32 %v1276, %v1315
    %v1326 = vmul.f32 %v1277, %v1314
    %v1327 = vmul.f32 %v1278, %v1313
    %v1328 = vmul.f32 %v1279, %v1312
    %v1329 = vmul.f32 %v1280, %v1311
    %v1330 = vmul.f32 %v1281, %v1310
    %v1331 = vmul.f32 %v1282, %v1309
    %v1332 = vmul.f32 %v1283, %v1308
    %v1333 = vmul.f32 %v1284, %v1307
    %v1334 = vmul.f32 %v1285, %v1306
    %v1335 = vmul.f32 %v1286, %v1305
    %v1336 = vmul.f32 %v1287, %v1320
    %v1337 = vadd.f32 %v1191, %v1321
    %v1338 = vadd.f32 %v1192, %v1322
    %v1339 = vadd.f32 %v1193, %v1323
    %v1340 = vadd.f32 %v1194, %v1324
    %v1341 = vadd.f32 %v1195, %v1325
    %v1342 = vadd.f32 %v1196, %v1326
    %v1343 = vadd.f32 %v1197, %v1327
    %v1344 = vadd.f32 %v1198, %v1328
    %v1345 = vadd.f32 %v1199, %v1329
    %v1346 = vadd.f32 %v1200, %v1330
    %v1347 = vadd.f32 %v1201, %v1331
    %v1348 = vadd.f32 %v1202, %v1332
    %v1349 = vadd.f32 %v1203, %v1333
    %v1350 = vadd.f32 %v1204, %v1334
    %v1351 = vadd.f32 %v1205, %v1335
    %v1352 = vadd.f32 %v1206, %v1336
    %v1353 = vrot.slane %v373, 2
    %v1354 = vrot.slane %v375, 2
    %v1355 = vrot.slane %v378, 2
    %v1356 = vrot.slane %v380, 2
    %v1357 = vrot.slane %v383, 2
    %v1358 = vrot.slane %v385, 2
    %v1359 = vrot.slane %v388, 2
    %v1360 = vrot.slane %v390, 2
    %v1361 = vrot.slane %v393, 2
    %v1362 = vrot.slane %v395, 2
    %v1363 = vrot.slane %v398, 2
    %v1364 = vrot.slane %v400, 2
    %v1365 = vrot.slane %v403, 2
    %v1366 = vrot.slane %v405, 2
    %v1367 = vrot.slane %v408, 2
    %v1368 = vrot.slane %v410, 2
    %v1369 = vsel %vm1304, %v1367, %v1368
    %v1370 = vsel %vm1304, %v1366, %v1367
    %v1371 = vsel %vm1304, %v1365, %v1366
    %v1372 = vsel %vm1304, %v1364, %v1365
    %v1373 = vsel %vm1304, %v1363, %v1364
    %v1374 = vsel %vm1304, %v1362, %v1363
    %v1375 = vsel %vm1304, %v1361, %v1362
    %v1376 = vsel %vm1304, %v1360, %v1361
    %v1377 = vsel %vm1304, %v1359, %v1360
    %v1378 = vsel %vm1304, %v1358, %v1359
    %v1379 = vsel %vm1304, %v1357, %v1358
    %v1380 = vsel %vm1304, %v1356, %v1357
    %v1381 = vsel %vm1304, %v1355, %v1356
    %v1382 = vsel %vm1304, %v1354, %v1355
    %v1383 = vsel %vm1304, %v1353, %v1354
    %v1384 = vsel %vm1304, %v1368, %v1353
    %v1385 = vmul.f32 %v1272, %v1383
    %v1386 = vmul.f32 %v1273, %v1382
    %v1387 = vmul.f32 %v1274, %v1381
    %v1388 = vmul.f32 %v1275, %v1380
    %v1389 = vmul.f32 %v1276, %v1379
    %v1390 = vmul.f32 %v1277, %v1378
    %v1391 = vmul.f32 %v1278, %v1377
    %v1392 = vmul.f32 %v1279, %v1376
    %v1393 = vmul.f32 %v1280, %v1375
    %v1394 = vmul.f32 %v1281, %v1374
    %v1395 = vmul.f32 %v1282, %v1373
    %v1396 = vmul.f32 %v1283, %v1372
    %v1397 = vmul.f32 %v1284, %v1371
    %v1398 = vmul.f32 %v1285, %v1370
    %v1399 = vmul.f32 %v1286, %v1369
    %v1400 = vmul.f32 %v1287, %v1384
    %v1401 = vadd.f32 %v1255, %v1385
    %v1402 = vadd.f32 %v1256, %v1386
    %v1403 = vadd.f32 %v1257, %v1387
    %v1404 = vadd.f32 %v1258, %v1388
    %v1405 = vadd.f32 %v1259, %v1389
    %v1406 = vadd.f32 %v1260, %v1390
    %v1407 = vadd.f32 %v1261, %v1391
    %v1408 = vadd.f32 %v1262, %v1392
    %v1409 = vadd.f32 %v1263, %v1393
    %v1410 = vadd.f32 %v1264, %v1394
    %v1411 = vadd.f32 %v1265, %v1395
    %v1412 = vadd.f32 %v1266, %v1396
    %v1413 = vadd.f32 %v1267, %v1397
    %v1414 = vadd.f32 %v1268, %v1398
    %v1415 = vadd.f32 %v1269, %v1399
    %v1416 = vadd.f32 %v1270, %v1400
    %s1417 = scalar_lea.vmem [#allocation2], 640
    %v1418 = vld [vmem:[%s1417] sm:$0xff]
    %v1419 = vld [vmem:[%s1417 + $0x8] sm:$0xff]
    %v1420 = vld [vmem:[%s1417 + $0x10] sm:$0xff]
    %v1421 = vld [vmem:[%s1417 + $0x18] sm:$0xff]
    %v1422 = vld [vmem:[%s1417 + $0x20] sm:$0xff]
    %v1423 = vld [vmem:[%s1417 + $0x28] sm:$0xff]
    %v1424 = vld [vmem:[%s1417 + $0x30] sm:$0xff]
    %v1425 = vld [vmem:[%s1417 + $0x38] sm:$0xff]
    %v1426 = vld [vmem:[%s1417 + $0x40] sm:$0xff]
    %v1427 = vld [vmem:[%s1417 + $0x48] sm:$0xff]
    %v1428 = vld [vmem:[%s1417 + $0x50] sm:$0xff]
    %v1429 = vld [vmem:[%s1417 + $0x58] sm:$0xff]
    %v1430 = vld [vmem:[%s1417 + $0x60] sm:$0xff]
    %v1431 = vld [vmem:[%s1417 + $0x68] sm:$0xff]
    %v1432 = vld [vmem:[%s1417 + $0x70] sm:$0xff]
    %v1433 = vld [vmem:[%s1417 + $0x78] sm:$0xff]
    %v1434 = vrot.slane %v324, 3
    %v1435 = vrot.slane %v326, 3
    %v1436 = vrot.slane %v329, 3
    %v1437 = vrot.slane %v331, 3
    %v1438 = vrot.slane %v334, 3
    %v1439 = vrot.slane %v336, 3
    %v1440 = vrot.slane %v339, 3
    %v1441 = vrot.slane %v341, 3
    %v1442 = vrot.slane %v344, 3
    %v1443 = vrot.slane %v346, 3
    %v1444 = vrot.slane %v349, 3
    %v1445 = vrot.slane %v351, 3
    %v1446 = vrot.slane %v354, 3
    %v1447 = vrot.slane %v356, 3
    %v1448 = vrot.slane %v359, 3
    %v1449 = vrot.slane %v361, 3
    %vm1450 = vcmp.lt.s32.totalorder %v525, 5
    %v1451 = vsel %vm1450, %v1448, %v1449
    %v1452 = vsel %vm1450, %v1447, %v1448
    %v1453 = vsel %vm1450, %v1446, %v1447
    %v1454 = vsel %vm1450, %v1445, %v1446
    %v1455 = vsel %vm1450, %v1444, %v1445
    %v1456 = vsel %vm1450, %v1443, %v1444
    %v1457 = vsel %vm1450, %v1442, %v1443
    %v1458 = vsel %vm1450, %v1441, %v1442
    %v1459 = vsel %vm1450, %v1440, %v1441
    %v1460 = vsel %vm1450, %v1439, %v1440
    %v1461 = vsel %vm1450, %v1438, %v1439
    %v1462 = vsel %vm1450, %v1437, %v1438
    %v1463 = vsel %vm1450, %v1436, %v1437
    %v1464 = vsel %vm1450, %v1435, %v1436
    %v1465 = vsel %vm1450, %v1434, %v1435
    %v1466 = vsel %vm1450, %v1449, %v1434
    %v1467 = vmul.f32 %v1418, %v1465
    %v1468 = vmul.f32 %v1419, %v1464
    %v1469 = vmul.f32 %v1420, %v1463
    %v1470 = vmul.f32 %v1421, %v1462
    %v1471 = vmul.f32 %v1422, %v1461
    %v1472 = vmul.f32 %v1423, %v1460
    %v1473 = vmul.f32 %v1424, %v1459
    %v1474 = vmul.f32 %v1425, %v1458
    %v1475 = vmul.f32 %v1426, %v1457
    %v1476 = vmul.f32 %v1427, %v1456
    %v1477 = vmul.f32 %v1428, %v1455
    %v1478 = vmul.f32 %v1429, %v1454
    %v1479 = vmul.f32 %v1430, %v1453
    %v1480 = vmul.f32 %v1431, %v1452
    %v1481 = vmul.f32 %v1432, %v1451
    %v1482 = vmul.f32 %v1433, %v1466
    %v1483 = vadd.f32 %v1337, %v1467
    %v1484 = vadd.f32 %v1338, %v1468
    %v1485 = vadd.f32 %v1339, %v1469
    %v1486 = vadd.f32 %v1340, %v1470
    %v1487 = vadd.f32 %v1341, %v1471
    %v1488 = vadd.f32 %v1342, %v1472
    %v1489 = vadd.f32 %v1343, %v1473
    %v1490 = vadd.f32 %v1344, %v1474
    %v1491 = vadd.f32 %v1345, %v1475
    %v1492 = vadd.f32 %v1346, %v1476
    %v1493 = vadd.f32 %v1347, %v1477
    %v1494 = vadd.f32 %v1348, %v1478
    %v1495 = vadd.f32 %v1349, %v1479
    %v1496 = vadd.f32 %v1350, %v1480
    %v1497 = vadd.f32 %v1351, %v1481
    %v1498 = vadd.f32 %v1352, %v1482
    %v1499 = vrot.slane %v373, 3
    %v1500 = vrot.slane %v375, 3
    %v1501 = vrot.slane %v378, 3
    %v1502 = vrot.slane %v380, 3
    %v1503 = vrot.slane %v383, 3
    %v1504 = vrot.slane %v385, 3
    %v1505 = vrot.slane %v388, 3
    %v1506 = vrot.slane %v390, 3
    %v1507 = vrot.slane %v393, 3
    %v1508 = vrot.slane %v395, 3
    %v1509 = vrot.slane %v398, 3
    %v1510 = vrot.slane %v400, 3
    %v1511 = vrot.slane %v403, 3
    %v1512 = vrot.slane %v405, 3
    %v1513 = vrot.slane %v408, 3
    %v1514 = vrot.slane %v410, 3
    %v1515 = vsel %vm1450, %v1513, %v1514
    %v1516 = vsel %vm1450, %v1512, %v1513
    %v1517 = vsel %vm1450, %v1511, %v1512
    %v1518 = vsel %vm1450, %v1510, %v1511
    %v1519 = vsel %vm1450, %v1509, %v1510
    %v1520 = vsel %vm1450, %v1508, %v1509
    %v1521 = vsel %vm1450, %v1507, %v1508
    %v1522 = vsel %vm1450, %v1506, %v1507
    %v1523 = vsel %vm1450, %v1505, %v1506
    %v1524 = vsel %vm1450, %v1504, %v1505
    %v1525 = vsel %vm1450, %v1503, %v1504
    %v1526 = vsel %vm1450, %v1502, %v1503
    %v1527 = vsel %vm1450, %v1501, %v1502
    %v1528 = vsel %vm1450, %v1500, %v1501
    %v1529 = vsel %vm1450, %v1499, %v1500
    %v1530 = vsel %vm1450, %v1514, %v1499
    %v1531 = vmul.f32 %v1418, %v1529
    %v1532 = vmul.f32 %v1419, %v1528
    %v1533 = vmul.f32 %v1420, %v1527
    %v1534 = vmul.f32 %v1421, %v1526
    %v1535 = vmul.f32 %v1422, %v1525
    %v1536 = vmul.f32 %v1423, %v1524
    %v1537 = vmul.f32 %v1424, %v1523
    %v1538 = vmul.f32 %v1425, %v1522
    %v1539 = vmul.f32 %v1426, %v1521
    %v1540 = vmul.f32 %v1427, %v1520
    %v1541 = vmul.f32 %v1428, %v1519
    %v1542 = vmul.f32 %v1429, %v1518
    %v1543 = vmul.f32 %v1430, %v1517
    %v1544 = vmul.f32 %v1431, %v1516
    %v1545 = vmul.f32 %v1432, %v1515
    %v1546 = vmul.f32 %v1433, %v1530
    %v1547 = vadd.f32 %v1401, %v1531
    %v1548 = vadd.f32 %v1402, %v1532
    %v1549 = vadd.f32 %v1403, %v1533
    %v1550 = vadd.f32 %v1404, %v1534
    %v1551 = vadd.f32 %v1405, %v1535
    %v1552 = vadd.f32 %v1406, %v1536
    %v1553 = vadd.f32 %v1407, %v1537
    %v1554 = vadd.f32 %v1408, %v1538
    %v1555 = vadd.f32 %v1409, %v1539
    %v1556 = vadd.f32 %v1410, %v1540
    %v1557 = vadd.f32 %v1411, %v1541
    %v1558 = vadd.f32 %v1412, %v1542
    %v1559 = vadd.f32 %v1413, %v1543
    %v1560 = vadd.f32 %v1414, %v1544
    %v1561 = vadd.f32 %v1415, %v1545
    %v1562 = vadd.f32 %v1416, %v1546
    %v1563 = vmul.f32 %v460, %v1483
    %v1564 = vmul.f32 %v461, %v1484
    %v1565 = vmul.f32 %v462, %v1485
    %v1566 = vmul.f32 %v463, %v1486
    %v1567 = vmul.f32 %v464, %v1487
    %v1568 = vmul.f32 %v465, %v1488
    %v1569 = vmul.f32 %v466, %v1489
    %v1570 = vmul.f32 %v467, %v1490
    %v1571 = vmul.f32 %v468, %v1491
    %v1572 = vmul.f32 %v469, %v1492
    %v1573 = vmul.f32 %v470, %v1493
    %v1574 = vmul.f32 %v471, %v1494
    %v1575 = vmul.f32 %v472, %v1495
    %v1576 = vmul.f32 %v473, %v1496
    %v1577 = vmul.f32 %v474, %v1497
    %v1578 = vmul.f32 %v475, %v1498
    %v1579 = vpack.c.bf16 %v1564, %v1563
    %v1580 = vpack.c.bf16 %v1566, %v1565
    %v1581 = vpack.c.bf16 %v1568, %v1567
    %v1582 = vpack.c.bf16 %v1570, %v1569
    %v1583 = vpack.c.bf16 %v1572, %v1571
    %v1584 = vpack.c.bf16 %v1574, %v1573
    %v1585 = vpack.c.bf16 %v1576, %v1575
    %v1586 = vpack.c.bf16 %v1578, %v1577
    %1587 = vmatpush.bf16.msra.mxu0 %v994
    %1588 = vmatpush.bf16.msra.mxu0 %v993
    %1589 = vmatpush.bf16.msra.mxu0 %v992
    %1590 = vmatpush.bf16.msra.mxu0 %v991
    %1591 = vmatpush.bf16.msra.mxu0 %v990
    %1592 = vmatpush.bf16.msra.mxu0 %v989
    %1593 = vmatpush.bf16.msra.mxu0 %v988
    %1594 = vmatpush.bf16.msra.mxu0 %v987
    %1595 = vmatmul.bf16.gmra.mxu0 %v1579
    %v1596 = vpop.f32.mrf.mxu0
    %v1597 = vadd.f32 0.0, %v1596
    %v1598 = vpop.f32.mrf.mxu0
    %v1599 = vadd.f32 0.0, %v1598
    %1600 = vmatmul.bf16.gmra.mxu0 %v1580
    %v1601 = vpop.f32.mrf.mxu0
    %v1602 = vadd.f32 0.0, %v1601
    %v1603 = vpop.f32.mrf.mxu0
    %v1604 = vadd.f32 0.0, %v1603
    %1605 = vmatmul.bf16.gmra.mxu0 %v1581
    %v1606 = vpop.f32.mrf.mxu0
    %v1607 = vadd.f32 0.0, %v1606
    %v1608 = vpop.f32.mrf.mxu0
    %v1609 = vadd.f32 0.0, %v1608
    %1610 = vmatmul.bf16.gmra.mxu0 %v1582
    %v1611 = vpop.f32.mrf.mxu0
    %v1612 = vadd.f32 0.0, %v1611
    %v1613 = vpop.f32.mrf.mxu0
    %v1614 = vadd.f32 0.0, %v1613
    %1615 = vmatmul.bf16.gmra.mxu0 %v1583
    %v1616 = vpop.f32.mrf.mxu0
    %v1617 = vadd.f32 0.0, %v1616
    %v1618 = vpop.f32.mrf.mxu0
    %v1619 = vadd.f32 0.0, %v1618
    %1620 = vmatmul.bf16.gmra.mxu0 %v1584
    %v1621 = vpop.f32.mrf.mxu0
    %v1622 = vadd.f32 0.0, %v1621
    %v1623 = vpop.f32.mrf.mxu0
    %v1624 = vadd.f32 0.0, %v1623
    %1625 = vmatmul.bf16.gmra.mxu0 %v1585
    %v1626 = vpop.f32.mrf.mxu0
    %v1627 = vadd.f32 0.0, %v1626
    %v1628 = vpop.f32.mrf.mxu0
    %v1629 = vadd.f32 0.0, %v1628
    %1630 = vmatmul.bf16.gmra.mxu0 %v1586
    %v1631 = vpop.f32.mrf.mxu0
    %v1632 = vadd.f32 0.0, %v1631
    %v1633 = vpop.f32.mrf.mxu0
    %v1634 = vadd.f32 0.0, %v1633
    %1635 = vdwg.mxu0
    %v1636 = vmax.f32 %v1013, 0.0
    %v1637 = vmax.f32 %v1015, 0.0
    %v1638 = vmax.f32 %v1018, 0.0
    %v1639 = vmax.f32 %v1020, 0.0
    %v1640 = vmax.f32 %v1023, 0.0
    %v1641 = vmax.f32 %v1025, 0.0
    %v1642 = vmax.f32 %v1028, 0.0
    %v1643 = vmax.f32 %v1030, 0.0
    %v1644 = vmax.f32 %v1033, 0.0
    %v1645 = vmax.f32 %v1035, 0.0
    %v1646 = vmax.f32 %v1038, 0.0
    %v1647 = vmax.f32 %v1040, 0.0
    %v1648 = vmax.f32 %v1043, 0.0
    %v1649 = vmax.f32 %v1045, 0.0
    %v1650 = vmax.f32 %v1048, 0.0
    %v1651 = vmax.f32 %v1050, 0.0
    %v1652 = vmax.f32 %v1636, %v1086
    %v1653 = vmax.f32 %v1637, %v1088
    %v1654 = vmax.f32 %v1638, %v1091
    %v1655 = vmax.f32 %v1639, %v1093
    %v1656 = vmax.f32 %v1640, %v1096
    %v1657 = vmax.f32 %v1641, %v1098
    %v1658 = vmax.f32 %v1642, %v1101
    %v1659 = vmax.f32 %v1643, %v1103
    %v1660 = vmax.f32 %v1644, %v1106
    %v1661 = vmax.f32 %v1645, %v1108
    %v1662 = vmax.f32 %v1646, %v1111
    %v1663 = vmax.f32 %v1647, %v1113
    %v1664 = vmax.f32 %v1648, %v1116
    %v1665 = vmax.f32 %v1649, %v1118
    %v1666 = vmax.f32 %v1650, %v1121
    %v1667 = vmax.f32 %v1651, %v1123
    %v1668 = vmax.f32 %v1652, %v1597
    %v1669 = vmax.f32 %v1653, %v1599
    %v1670 = vmax.f32 %v1654, %v1602
    %v1671 = vmax.f32 %v1655, %v1604
    %v1672 = vmax.f32 %v1656, %v1607
    %v1673 = vmax.f32 %v1657, %v1609
    %v1674 = vmax.f32 %v1658, %v1612
    %v1675 = vmax.f32 %v1659, %v1614
    %v1676 = vmax.f32 %v1660, %v1617
    %v1677 = vmax.f32 %v1661, %v1619
    %v1678 = vmax.f32 %v1662, %v1622
    %v1679 = vmax.f32 %v1663, %v1624
    %v1680 = vmax.f32 %v1664, %v1627
    %v1681 = vmax.f32 %v1665, %v1629
    %v1682 = vmax.f32 %v1666, %v1632
    %v1683 = vmax.f32 %v1667, %v1634
    %v1684 = vsub.f32 0.0, %v1668
    %v1685 = vsub.f32 0.0, %v1669
    %v1686 = vsub.f32 0.0, %v1670
    %v1687 = vsub.f32 0.0, %v1671
    %v1688 = vsub.f32 0.0, %v1672
    %v1689 = vsub.f32 0.0, %v1673
    %v1690 = vsub.f32 0.0, %v1674
    %v1691 = vsub.f32 0.0, %v1675
    %v1692 = vsub.f32 0.0, %v1676
    %v1693 = vsub.f32 0.0, %v1677
    %v1694 = vsub.f32 0.0, %v1678
    %v1695 = vsub.f32 0.0, %v1679
    %v1696 = vsub.f32 0.0, %v1680
    %v1697 = vsub.f32 0.0, %v1681
    %v1698 = vsub.f32 0.0, %v1682
    %v1699 = vsub.f32 0.0, %v1683
    %v1700 = vmul.f32 %v1684, 1.442695
    %v1701 = vpow.pop %v1700
    %v1702 = vmul.f32 %v1685, 1.442695
    %v1703 = vpow.pop %v1702
    %v1704 = vmul.f32 %v1686, 1.442695
    %v1705 = vpow.pop %v1704
    %v1706 = vmul.f32 %v1687, 1.442695
    %v1707 = vpow.pop %v1706
    %v1708 = vmul.f32 %v1688, 1.442695
    %v1709 = vpow.pop %v1708
    %v1710 = vmul.f32 %v1689, 1.442695
    %v1711 = vpow.pop %v1710
    %v1712 = vmul.f32 %v1690, 1.442695
    %v1713 = vpow.pop %v1712
    %v1714 = vmul.f32 %v1691, 1.442695
    %v1715 = vpow.pop %v1714
    %v1716 = vmul.f32 %v1692, 1.442695
    %v1717 = vpow.pop %v1716
    %v1718 = vmul.f32 %v1693, 1.442695
    %v1719 = vpow.pop %v1718
    %v1720 = vmul.f32 %v1694, 1.442695
    %v1721 = vpow.pop %v1720
    %v1722 = vmul.f32 %v1695, 1.442695
    %v1723 = vpow.pop %v1722
    %v1724 = vmul.f32 %v1696, 1.442695
    %v1725 = vpow.pop %v1724
    %v1726 = vmul.f32 %v1697, 1.442695
    %v1727 = vpow.pop %v1726
    %v1728 = vmul.f32 %v1698, 1.442695
    %v1729 = vpow.pop %v1728
    %v1730 = vmul.f32 %v1699, 1.442695
    %v1731 = vpow.pop %v1730
    %v1732 = vmul.f32 %v1701, 6.0
    %v1733 = vmul.f32 %v1703, 6.0
    %v1734 = vmul.f32 %v1705, 6.0
    %v1735 = vmul.f32 %v1707, 6.0
    %v1736 = vmul.f32 %v1709, 6.0
    %v1737 = vmul.f32 %v1711, 6.0
    %v1738 = vmul.f32 %v1713, 6.0
    %v1739 = vmul.f32 %v1715, 6.0
    %v1740 = vmul.f32 %v1717, 6.0
    %v1741 = vmul.f32 %v1719, 6.0
    %v1742 = vmul.f32 %v1721, 6.0
    %v1743 = vmul.f32 %v1723, 6.0
    %v1744 = vmul.f32 %v1725, 6.0
    %v1745 = vmul.f32 %v1727, 6.0
    %v1746 = vmul.f32 %v1729, 6.0
    %v1747 = vmul.f32 %v1731, 6.0
    %v1748 = vsub.f32 %v1013, %v1668
    %v1749 = vsub.f32 %v1015, %v1669
    %v1750 = vsub.f32 %v1018, %v1670
    %v1751 = vsub.f32 %v1020, %v1671
    %v1752 = vsub.f32 %v1023, %v1672
    %v1753 = vsub.f32 %v1025, %v1673
    %v1754 = vsub.f32 %v1028, %v1674
    %v1755 = vsub.f32 %v1030, %v1675
    %v1756 = vsub.f32 %v1033, %v1676
    %v1757 = vsub.f32 %v1035, %v1677
    %v1758 = vsub.f32 %v1038, %v1678
    %v1759 = vsub.f32 %v1040, %v1679
    %v1760 = vsub.f32 %v1043, %v1680
    %v1761 = vsub.f32 %v1045, %v1681
    %v1762 = vsub.f32 %v1048, %v1682
    %v1763 = vsub.f32 %v1050, %v1683
    %v1764 = vmul.f32 %v1748, 1.442695
    %v1765 = vpow.pop %v1764
    %v1766 = vmul.f32 %v1749, 1.442695
    %v1767 = vpow.pop %v1766
    %v1768 = vmul.f32 %v1750, 1.442695
    %v1769 = vpow.pop %v1768
    %v1770 = vmul.f32 %v1751, 1.442695
    %v1771 = vpow.pop %v1770
    %v1772 = vmul.f32 %v1752, 1.442695
    %v1773 = vpow.pop %v1772
    %v1774 = vmul.f32 %v1753, 1.442695
    %v1775 = vpow.pop %v1774
    %v1776 = vmul.f32 %v1754, 1.442695
    %v1777 = vpow.pop %v1776
    %v1778 = vmul.f32 %v1755, 1.442695
    %v1779 = vpow.pop %v1778
    %v1780 = vmul.f32 %v1756, 1.442695
    %v1781 = vpow.pop %v1780
    %v1782 = vmul.f32 %v1757, 1.442695
    %v1783 = vpow.pop %v1782
    %v1784 = vmul.f32 %v1758, 1.442695
    %v1785 = vpow.pop %v1784
    %v1786 = vmul.f32 %v1759, 1.442695
    %v1787 = vpow.pop %v1786
    %v1788 = vmul.f32 %v1760, 1.442695
    %v1789 = vpow.pop %v1788
    %v1790 = vmul.f32 %v1761, 1.442695
    %v1791 = vpow.pop %v1790
    %v1792 = vmul.f32 %v1762, 1.442695
    %v1793 = vpow.pop %v1792
    %v1794 = vmul.f32 %v1763, 1.442695
    %v1795 = vpow.pop %v1794
    %v1796 = vadd.f32 %v1732, %v1765
    %v1797 = vadd.f32 %v1733, %v1767
    %v1798 = vadd.f32 %v1734, %v1769
    %v1799 = vadd.f32 %v1735, %v1771
    %v1800 = vadd.f32 %v1736, %v1773
    %v1801 = vadd.f32 %v1737, %v1775
    %v1802 = vadd.f32 %v1738, %v1777
    %v1803 = vadd.f32 %v1739, %v1779
    %v1804 = vadd.f32 %v1740, %v1781
    %v1805 = vadd.f32 %v1741, %v1783
    %v1806 = vadd.f32 %v1742, %v1785
    %v1807 = vadd.f32 %v1743, %v1787
    %v1808 = vadd.f32 %v1744, %v1789
    %v1809 = vadd.f32 %v1745, %v1791
    %v1810 = vadd.f32 %v1746, %v1793
    %v1811 = vadd.f32 %v1747, %v1795
    %v1812 = vmul.f32 %v1765, %v915
    %v1813 = vmul.f32 %v1767, %v916
    %v1814 = vmul.f32 %v1769, %v917
    %v1815 = vmul.f32 %v1771, %v918
    %v1816 = vmul.f32 %v1773, %v919
    %v1817 = vmul.f32 %v1775, %v920
    %v1818 = vmul.f32 %v1777, %v921
    %v1819 = vmul.f32 %v1779, %v922
    %v1820 = vmul.f32 %v1781, %v923
    %v1821 = vmul.f32 %v1783, %v924
    %v1822 = vmul.f32 %v1785, %v925
    %v1823 = vmul.f32 %v1787, %v926
    %v1824 = vmul.f32 %v1789, %v927
    %v1825 = vmul.f32 %v1791, %v928
    %v1826 = vmul.f32 %v1793, %v929
    %v1827 = vmul.f32 %v1795, %v930
    %v1828 = vadd.f32 %v1812, 0.0
    %v1829 = vadd.f32 %v1813, 0.0
    %v1830 = vadd.f32 %v1814, 0.0
    %v1831 = vadd.f32 %v1815, 0.0
    %v1832 = vadd.f32 %v1816, 0.0
    %v1833 = vadd.f32 %v1817, 0.0
    %v1834 = vadd.f32 %v1818, 0.0
    %v1835 = vadd.f32 %v1819, 0.0
    %v1836 = vadd.f32 %v1820, 0.0
    %v1837 = vadd.f32 %v1821, 0.0
    %v1838 = vadd.f32 %v1822, 0.0
    %v1839 = vadd.f32 %v1823, 0.0
    %v1840 = vadd.f32 %v1824, 0.0
    %v1841 = vadd.f32 %v1825, 0.0
    %v1842 = vadd.f32 %v1826, 0.0
    %v1843 = vadd.f32 %v1827, 0.0
    %v1844 = vsub.f32 %v1086, %v1668
    %v1845 = vsub.f32 %v1088, %v1669
    %v1846 = vsub.f32 %v1091, %v1670
    %v1847 = vsub.f32 %v1093, %v1671
    %v1848 = vsub.f32 %v1096, %v1672
    %v1849 = vsub.f32 %v1098, %v1673
    %v1850 = vsub.f32 %v1101, %v1674
    %v1851 = vsub.f32 %v1103, %v1675
    %v1852 = vsub.f32 %v1106, %v1676
    %v1853 = vsub.f32 %v1108, %v1677
    %v1854 = vsub.f32 %v1111, %v1678
    %v1855 = vsub.f32 %v1113, %v1679
    %v1856 = vsub.f32 %v1116, %v1680
    %v1857 = vsub.f32 %v1118, %v1681
    %v1858 = vsub.f32 %v1121, %v1682
    %v1859 = vsub.f32 %v1123, %v1683
    %v1860 = vmul.f32 %v1844, 1.442695
    %v1861 = vpow.pop %v1860
    %v1862 = vmul.f32 %v1845, 1.442695
    %v1863 = vpow.pop %v1862
    %v1864 = vmul.f32 %v1846, 1.442695
    %v1865 = vpow.pop %v1864
    %v1866 = vmul.f32 %v1847, 1.442695
    %v1867 = vpow.pop %v1866
    %v1868 = vmul.f32 %v1848, 1.442695
    %v1869 = vpow.pop %v1868
    %v1870 = vmul.f32 %v1849, 1.442695
    %v1871 = vpow.pop %v1870
    %v1872 = vmul.f32 %v1850, 1.442695
    %v1873 = vpow.pop %v1872
    %v1874 = vmul.f32 %v1851, 1.442695
    %v1875 = vpow.pop %v1874
    %v1876 = vmul.f32 %v1852, 1.442695
    %v1877 = vpow.pop %v1876
    %v1878 = vmul.f32 %v1853, 1.442695
    %v1879 = vpow.pop %v1878
    %v1880 = vmul.f32 %v1854, 1.442695
    %v1881 = vpow.pop %v1880
    %v1882 = vmul.f32 %v1855, 1.442695
    %v1883 = vpow.pop %v1882
    %v1884 = vmul.f32 %v1856, 1.442695
    %v1885 = vpow.pop %v1884
    %v1886 = vmul.f32 %v1857, 1.442695
    %v1887 = vpow.pop %v1886
    %v1888 = vmul.f32 %v1858, 1.442695
    %v1889 = vpow.pop %v1888
    %v1890 = vmul.f32 %v1859, 1.442695
    %v1891 = vpow.pop %v1890
    %v1892 = vadd.f32 %v1796, %v1861
    %v1893 = vadd.f32 %v1797, %v1863
    %v1894 = vadd.f32 %v1798, %v1865
    %v1895 = vadd.f32 %v1799, %v1867
    %v1896 = vadd.f32 %v1800, %v1869
    %v1897 = vadd.f32 %v1801, %v1871
    %v1898 = vadd.f32 %v1802, %v1873
    %v1899 = vadd.f32 %v1803, %v1875
    %v1900 = vadd.f32 %v1804, %v1877
    %v1901 = vadd.f32 %v1805, %v1879
    %v1902 = vadd.f32 %v1806, %v1881
    %v1903 = vadd.f32 %v1807, %v1883
    %v1904 = vadd.f32 %v1808, %v1885
    %v1905 = vadd.f32 %v1809, %v1887
    %v1906 = vadd.f32 %v1810, %v1889
    %v1907 = vadd.f32 %v1811, %v1891
    %v1908 = vmul.f32 %v1861, %v373
    %v1909 = vmul.f32 %v1863, %v375
    %v1910 = vmul.f32 %v1865, %v378
    %v1911 = vmul.f32 %v1867, %v380
    %v1912 = vmul.f32 %v1869, %v383
    %v1913 = vmul.f32 %v1871, %v385
    %v1914 = vmul.f32 %v1873, %v388
    %v1915 = vmul.f32 %v1875, %v390
    %v1916 = vmul.f32 %v1877, %v393
    %v1917 = vmul.f32 %v1879, %v395
    %v1918 = vmul.f32 %v1881, %v398
    %v1919 = vmul.f32 %v1883, %v400
    %v1920 = vmul.f32 %v1885, %v403
    %v1921 = vmul.f32 %v1887, %v405
    %v1922 = vmul.f32 %v1889, %v408
    %v1923 = vmul.f32 %v1891, %v410
    %v1924 = vadd.f32 %v1828, %v1908
    %v1925 = vadd.f32 %v1829, %v1909
    %v1926 = vadd.f32 %v1830, %v1910
    %v1927 = vadd.f32 %v1831, %v1911
    %v1928 = vadd.f32 %v1832, %v1912
    %v1929 = vadd.f32 %v1833, %v1913
    %v1930 = vadd.f32 %v1834, %v1914
    %v1931 = vadd.f32 %v1835, %v1915
    %v1932 = vadd.f32 %v1836, %v1916
    %v1933 = vadd.f32 %v1837, %v1917
    %v1934 = vadd.f32 %v1838, %v1918
    %v1935 = vadd.f32 %v1839, %v1919
    %v1936 = vadd.f32 %v1840, %v1920
    %v1937 = vadd.f32 %v1841, %v1921
    %v1938 = vadd.f32 %v1842, %v1922
    %v1939 = vadd.f32 %v1843, %v1923
    %v1940 = vsub.f32 %v1597, %v1668
    %v1941 = vsub.f32 %v1599, %v1669
    %v1942 = vsub.f32 %v1602, %v1670
    %v1943 = vsub.f32 %v1604, %v1671
    %v1944 = vsub.f32 %v1607, %v1672
    %v1945 = vsub.f32 %v1609, %v1673
    %v1946 = vsub.f32 %v1612, %v1674
    %v1947 = vsub.f32 %v1614, %v1675
    %v1948 = vsub.f32 %v1617, %v1676
    %v1949 = vsub.f32 %v1619, %v1677
    %v1950 = vsub.f32 %v1622, %v1678
    %v1951 = vsub.f32 %v1624, %v1679
    %v1952 = vsub.f32 %v1627, %v1680
    %v1953 = vsub.f32 %v1629, %v1681
    %v1954 = vsub.f32 %v1632, %v1682
    %v1955 = vsub.f32 %v1634, %v1683
    %v1956 = vmul.f32 %v1940, 1.442695
    %v1957 = vpow.pop %v1956
    %v1958 = vmul.f32 %v1941, 1.442695
    %v1959 = vpow.pop %v1958
    %v1960 = vmul.f32 %v1942, 1.442695
    %v1961 = vpow.pop %v1960
    %v1962 = vmul.f32 %v1943, 1.442695
    %v1963 = vpow.pop %v1962
    %v1964 = vmul.f32 %v1944, 1.442695
    %v1965 = vpow.pop %v1964
    %v1966 = vmul.f32 %v1945, 1.442695
    %v1967 = vpow.pop %v1966
    %v1968 = vmul.f32 %v1946, 1.442695
    %v1969 = vpow.pop %v1968
    %v1970 = vmul.f32 %v1947, 1.442695
    %v1971 = vpow.pop %v1970
    %v1972 = vmul.f32 %v1948, 1.442695
    %v1973 = vpow.pop %v1972
    %v1974 = vmul.f32 %v1949, 1.442695
    %v1975 = vpow.pop %v1974
    %v1976 = vmul.f32 %v1950, 1.442695
    %v1977 = vpow.pop %v1976
    %v1978 = vmul.f32 %v1951, 1.442695
    %v1979 = vpow.pop %v1978
    %v1980 = vmul.f32 %v1952, 1.442695
    %v1981 = vpow.pop %v1980
    %v1982 = vmul.f32 %v1953, 1.442695
    %v1983 = vpow.pop %v1982
    %v1984 = vmul.f32 %v1954, 1.442695
    %v1985 = vpow.pop %v1984
    %v1986 = vmul.f32 %v1955, 1.442695
    %v1987 = vpow.pop %v1986
    %v1988 = vadd.f32 %v1892, %v1957
    %v1989 = vadd.f32 %v1893, %v1959
    %v1990 = vadd.f32 %v1894, %v1961
    %v1991 = vadd.f32 %v1895, %v1963
    %v1992 = vadd.f32 %v1896, %v1965
    %v1993 = vadd.f32 %v1897, %v1967
    %v1994 = vadd.f32 %v1898, %v1969
    %v1995 = vadd.f32 %v1899, %v1971
    %v1996 = vadd.f32 %v1900, %v1973
    %v1997 = vadd.f32 %v1901, %v1975
    %v1998 = vadd.f32 %v1902, %v1977
    %v1999 = vadd.f32 %v1903, %v1979
    %v2000 = vadd.f32 %v1904, %v1981
    %v2001 = vadd.f32 %v1905, %v1983
    %v2002 = vadd.f32 %v1906, %v1985
    %v2003 = vadd.f32 %v1907, %v1987
    %v2004 = vmul.f32 %v1957, %v1547
    %v2005 = vmul.f32 %v1959, %v1548
    %v2006 = vmul.f32 %v1961, %v1549
    %v2007 = vmul.f32 %v1963, %v1550
    %v2008 = vmul.f32 %v1965, %v1551
    %v2009 = vmul.f32 %v1967, %v1552
    %v2010 = vmul.f32 %v1969, %v1553
    %v2011 = vmul.f32 %v1971, %v1554
    %v2012 = vmul.f32 %v1973, %v1555
    %v2013 = vmul.f32 %v1975, %v1556
    %v2014 = vmul.f32 %v1977, %v1557
    %v2015 = vmul.f32 %v1979, %v1558
    %v2016 = vmul.f32 %v1981, %v1559
    %v2017 = vmul.f32 %v1983, %v1560
    %v2018 = vmul.f32 %v1985, %v1561
    %v2019 = vmul.f32 %v1987, %v1562
    %v2020 = vadd.f32 %v1924, %v2004
    %v2021 = vadd.f32 %v1925, %v2005
    %v2022 = vadd.f32 %v1926, %v2006
    %v2023 = vadd.f32 %v1927, %v2007
    %v2024 = vadd.f32 %v1928, %v2008
    %v2025 = vadd.f32 %v1929, %v2009
    %v2026 = vadd.f32 %v1930, %v2010
    %v2027 = vadd.f32 %v1931, %v2011
    %v2028 = vadd.f32 %v1932, %v2012
    %v2029 = vadd.f32 %v1933, %v2013
    %v2030 = vadd.f32 %v1934, %v2014
    %v2031 = vadd.f32 %v1935, %v2015
    %v2032 = vadd.f32 %v1936, %v2016
    %v2033 = vadd.f32 %v1937, %v2017
    %v2034 = vadd.f32 %v1938, %v2018
    %v2035 = vadd.f32 %v1939, %v2019
    %v2036 = vrcp.pop %v1988
    %v2037 = vrcp.pop %v1989
    %v2038 = vrcp.pop %v1990
    %v2039 = vrcp.pop %v1991
    %v2040 = vrcp.pop %v1992
    %v2041 = vrcp.pop %v1993
    %v2042 = vrcp.pop %v1994
    %v2043 = vrcp.pop %v1995
    %v2044 = vrcp.pop %v1996
    %v2045 = vrcp.pop %v1997
    %v2046 = vrcp.pop %v1998
    %v2047 = vrcp.pop %v1999
    %v2048 = vrcp.pop %v2000
    %v2049 = vrcp.pop %v2001
    %v2050 = vrcp.pop %v2002
    %v2051 = vrcp.pop %v2003
    %v2052 = vmul.f32 %v2020, %v2036
    %v2053 = vmul.f32 %v2021, %v2037
    %v2054 = vmul.f32 %v2022, %v2038
    %v2055 = vmul.f32 %v2023, %v2039
    %v2056 = vmul.f32 %v2024, %v2040
    %v2057 = vmul.f32 %v2025, %v2041
    %v2058 = vmul.f32 %v2026, %v2042
    %v2059 = vmul.f32 %v2027, %v2043
    %v2060 = vmul.f32 %v2028, %v2044
    %v2061 = vmul.f32 %v2029, %v2045
    %v2062 = vmul.f32 %v2030, %v2046
    %v2063 = vmul.f32 %v2031, %v2047
    %v2064 = vmul.f32 %v2032, %v2048
    %v2065 = vmul.f32 %v2033, %v2049
    %v2066 = vmul.f32 %v2034, %v2050
    %v2067 = vmul.f32 %v2035, %v2051
    %v2068 = vpack.c.bf16 %v2053, %v2052
    %v2069 = vpack.c.bf16 %v2055, %v2054
    %v2070 = vpack.c.bf16 %v2057, %v2056
    %v2071 = vpack.c.bf16 %v2059, %v2058
    %v2072 = vpack.c.bf16 %v2061, %v2060
    %v2073 = vpack.c.bf16 %v2063, %v2062
    %v2074 = vpack.c.bf16 %v2065, %v2064
    %v2075 = vpack.c.bf16 %v2067, %v2066
    %v2076 = vld [vmem:[%s3] sm:$0xf]
    %v2077 = vld [vmem:[%s3 + $0x4] sm:$0xf]
    %v2078 = vld [vmem:[%s3 + $0x8] sm:$0xf]
    %v2079 = vld [vmem:[%s3 + $0xc] sm:$0xf]
    %v2080 = vld [vmem:[%s3 + $0x10] sm:$0xf]
    %v2081 = vld [vmem:[%s3 + $0x14] sm:$0xf]
    %v2082 = vld [vmem:[%s3 + $0x18] sm:$0xf]
    %v2083 = vld [vmem:[%s3 + $0x1c] sm:$0xf]
    %v2084 = vld [vmem:[%s3 + $0x20] sm:$0xf]
    %v2085 = vld [vmem:[%s3 + $0x24] sm:$0xf]
    %v2086 = vld [vmem:[%s3 + $0x28] sm:$0xf]
    %v2087 = vld [vmem:[%s3 + $0x2c] sm:$0xf]
    %v2088 = vld [vmem:[%s3 + $0x30] sm:$0xf]
    %v2089 = vld [vmem:[%s3 + $0x34] sm:$0xf]
    %v2090 = vld [vmem:[%s3 + $0x38] sm:$0xf]
    %v2091 = vld [vmem:[%s3 + $0x3c] sm:$0xf]
    %v2092 = vld [vmem:[%s4] sm:$0x1]
    %v2094 = vperm.slane %v2092, 0
    %v2112 = vunpack.c.l.b16 %v2076
    %v2113 = vunpack.c.l.b16 %v2077
    %v2114 = vunpack.c.l.b16 %v2078
    %v2115 = vunpack.c.l.b16 %v2079
    %v2116 = vunpack.c.l.b16 %v2080
    %v2117 = vunpack.c.l.b16 %v2081
    %v2118 = vunpack.c.l.b16 %v2082
    %v2119 = vunpack.c.l.b16 %v2083
    %v2120 = vunpack.c.l.b16 %v2084
    %v2121 = vunpack.c.l.b16 %v2085
    %v2122 = vunpack.c.l.b16 %v2086
    %v2123 = vunpack.c.l.b16 %v2087
    %v2124 = vunpack.c.l.b16 %v2088
    %v2125 = vunpack.c.l.b16 %v2089
    %v2126 = vunpack.c.l.b16 %v2090
    %v2127 = vunpack.c.l.b16 %v2091
    %v2128 = vpack.c.b16 %v2113, %v2112
    %v2129 = vpack.c.b16 %v2115, %v2114
    %v2130 = vpack.c.b16 %v2117, %v2116
    %v2131 = vpack.c.b16 %v2119, %v2118
    %v2132 = vpack.c.b16 %v2121, %v2120
    %v2133 = vpack.c.b16 %v2123, %v2122
    %v2134 = vpack.c.b16 %v2125, %v2124
    %v2135 = vpack.c.b16 %v2127, %v2126
    %2144 = vmatpush.bf16.msra.mxu0 %v2135
    %2145 = vmatpush.bf16.msra.mxu0 %v2134
    %2146 = vmatpush.bf16.msra.mxu0 %v2133
    %2147 = vmatpush.bf16.msra.mxu0 %v2132
    %2148 = vmatpush.bf16.msra.mxu0 %v2131
    %2149 = vmatpush.bf16.msra.mxu0 %v2130
    %2150 = vmatpush.bf16.msra.mxu0 %v2129
    %2151 = vmatpush.bf16.msra.mxu0 %v2128
    %2152 = vmatmul.bf16.gmra.mxu0 %v2068
    %v2153 = vpop.f32.mrf.mxu0
    %v2154 = vadd.f32 %v2094, %v2153
    %v2155 = vpop.f32.mrf.mxu0
    %v2156 = vadd.f32 %v2094, %v2155
    %2157 = vmatmul.bf16.gmra.mxu0 %v2069
    %v2158 = vpop.f32.mrf.mxu0
    %v2159 = vadd.f32 %v2094, %v2158
    %v2160 = vpop.f32.mrf.mxu0
    %v2161 = vadd.f32 %v2094, %v2160
    %2162 = vmatmul.bf16.gmra.mxu0 %v2070
    %v2163 = vpop.f32.mrf.mxu0
    %v2164 = vadd.f32 %v2094, %v2163
    %v2165 = vpop.f32.mrf.mxu0
    %v2166 = vadd.f32 %v2094, %v2165
    %2167 = vmatmul.bf16.gmra.mxu0 %v2071
    %v2168 = vpop.f32.mrf.mxu0
    %v2169 = vadd.f32 %v2094, %v2168
    %v2170 = vpop.f32.mrf.mxu0
    %v2171 = vadd.f32 %v2094, %v2170
    %2172 = vmatmul.bf16.gmra.mxu0 %v2072
    %v2173 = vpop.f32.mrf.mxu0
    %v2174 = vadd.f32 %v2094, %v2173
    %v2175 = vpop.f32.mrf.mxu0
    %v2176 = vadd.f32 %v2094, %v2175
    %2177 = vmatmul.bf16.gmra.mxu0 %v2073
    %v2178 = vpop.f32.mrf.mxu0
    %v2179 = vadd.f32 %v2094, %v2178
    %v2180 = vpop.f32.mrf.mxu0
    %v2181 = vadd.f32 %v2094, %v2180
    %2182 = vmatmul.bf16.gmra.mxu0 %v2074
    %v2183 = vpop.f32.mrf.mxu0
    %v2184 = vadd.f32 %v2094, %v2183
    %v2185 = vpop.f32.mrf.mxu0
    %v2186 = vadd.f32 %v2094, %v2185
    %2187 = vmatmul.bf16.gmra.mxu0 %v2075
    %v2188 = vpop.f32.mrf.mxu0
    %v2189 = vadd.f32 %v2094, %v2188
    %v2190 = vpop.f32.mrf.mxu0
    %v2191 = vadd.f32 %v2094, %v2190
    %2192 = vdwg.mxu0
    %2193 = vst [vmem:[%s6] sm:$0xff] %v2154
    %2194 = vst [vmem:[%s6 + $0x8] sm:$0xff] %v2156
    %2195 = vst [vmem:[%s6 + $0x10] sm:$0xff] %v2159
    %2196 = vst [vmem:[%s6 + $0x18] sm:$0xff] %v2161
    %2197 = vst [vmem:[%s6 + $0x20] sm:$0xff] %v2164
    %2198 = vst [vmem:[%s6 + $0x28] sm:$0xff] %v2166
    %2199 = vst [vmem:[%s6 + $0x30] sm:$0xff] %v2169
    %2200 = vst [vmem:[%s6 + $0x38] sm:$0xff] %v2171
    %2201 = vst [vmem:[%s6 + $0x40] sm:$0xff] %v2174
    %2202 = vst [vmem:[%s6 + $0x48] sm:$0xff] %v2176
    %2203 = vst [vmem:[%s6 + $0x50] sm:$0xff] %v2179
    %2204 = vst [vmem:[%s6 + $0x58] sm:$0xff] %v2181
    %2205 = vst [vmem:[%s6 + $0x60] sm:$0xff] %v2184
    %2206 = vst [vmem:[%s6 + $0x68] sm:$0xff] %v2186
    %2207 = vst [vmem:[%s6 + $0x70] sm:$0xff] %v2189
    %2208 = vst [vmem:[%s6 + $0x78] sm:$0xff] %v2191
    // Predicated region
    $region30: #{multi_dilate_local_attention.1} parent=1 // pred_check
      _
    $region31: #{multi_dilate_local_attention.1} parent=1 // pred_check_branch
      %2210 = sbr.rel (0) target = $region33
    $region32: #{multi_dilate_local_attention.1} parent=1 // pred_region
      _
    $region33: #{multi_dilate_local_attention.1} parent=1 // pred_fallthru
      _
    // Predicated region
    $region34: #{multi_dilate_local_attention.1} parent=1 // pred_check
      _
    $region35: #{multi_dilate_local_attention.1} parent=1 // pred_check_branch
      %2212 = sbr.rel (0) target = $region37
    $region36: #{multi_dilate_local_attention.1} parent=1 // pred_region
      _
    $region37: #{multi_dilate_local_attention.1} parent=1 // pred_fallthru
      _
    // Predicated region
    $region38: #{multi_dilate_local_attention.1} parent=1 // pred_check
      _
    $region39: #{multi_dilate_local_attention.1} parent=1 // pred_check_branch
      %2214 = sbr.rel (0) target = $region41
    $region40: #{multi_dilate_local_attention.1} parent=1 // pred_region
      _
    $region41: #{multi_dilate_local_attention.1} parent=1 // pred_fallthru
      _
    // Predicated region
    $region42: #{multi_dilate_local_attention.1} parent=1 // pred_check
      _
    $region43: #{multi_dilate_local_attention.1} parent=1 // pred_check_branch
      %2216 = sbr.rel (0) target = $region45
    $region44: #{multi_dilate_local_attention.1} parent=1 // pred_region
      _
    $region45: #{multi_dilate_local_attention.1} parent=1 // pred_fallthru
      _
    %2217 = vsyncpa [#allocation3], 1

</llo_original>
